<compile_context>
chip_gen: v7x
topology: tpu7x:2x2x1
jax: 0.10.0
libtpu: 0.0.40
codegen_flags: <defaults>
</compile_context>

<pallas_src>
import functools
import math

import jax
import jax.numpy as jnp
from jax import lax
from jax.experimental import pallas as pl
from jax.experimental.pallas import tpu as pltpu


def _real_tail_kernel(x_ref, w1_ref, b1_ref, w2_ref, b2_ref, o_ref, acc_ref,
                      *, hidden_dim, inv_seq, approximate_gelu):
    # x_ref:   (TM, E)      row tile of the flattened (B*S, E) input (all rows from one batch)
    # w1_ref:  (E, 2H)      both heads' gamma-folded first Linear, concatenated on the out axis
    # b1_ref:  (1, 2H)      both heads' beta-folded first bias
    # w2_ref:  (1, 2H)      both heads' second Linear weights packed as a single row
    # b2_ref:  (1, 2)       [b2_sign, b2_abs]
    # o_ref:   (1, 2, 128)  per-batch [m_sign, m_abs] (lane-broadcast), written at the last tile
    # acc_ref: (1, 2H)      running per-batch sum of GELU activations (VMEM scratch)
    t = pl.program_id(1)
    n_t = pl.num_programs(1)

    x = x_ref[...].astype(jnp.float32)                        # (TM, E)

    # LayerNorm stats in one pass; gamma/beta are folded into w1/b1 at trace time.
    mu = jnp.mean(x, axis=-1, keepdims=True)
    ex2 = jnp.mean(x * x, axis=-1, keepdims=True)
    var = jnp.maximum(ex2 - mu * mu, 0.0)                     # clamp: single-pass var can dip < 0
    xn = (x - mu) * lax.rsqrt(var + jnp.float32(1e-5))

    # Fused first Linear for both heads: one MXU pass with a 2H-wide output (f32 accumulation).
    h = jnp.dot(xn.astype(w1_ref.dtype), w1_ref[...],
                preferred_element_type=jnp.float32) + b1_ref[...]        # (TM, 2H) f32

    if approximate_gelu:
        # tanh GELU: the transcendental runs on the EUP slot, keeping the VALU free.
        c = jnp.float32(math.sqrt(2.0 / math.pi))
        g = 0.5 * h * (1.0 + jnp.tanh(c * (h + jnp.float32(0.044715) * h * h * h)))
    else:
        g = 0.5 * h * (1.0 + lax.erf(h * jnp.float32(1.0 / math.sqrt(2.0))))

    # The N=1 second Linear and the mean over the sequence are both linear, so we only need the
    # per-batch sum of the GELU activations; the tiny w2 reduction happens once, at the last tile.
    tile_sum = jnp.sum(g, axis=0, keepdims=True)              # (1, 2H)

    @pl.when(t == 0)
    def _init():
        acc_ref[...] = tile_sum

    @pl.when(t > 0)
    def _accumulate():
        acc_ref[...] = acc_ref[...] + tile_sum

    @pl.when(t == n_t - 1)
    def _finalize():
        prod = acc_ref[...] * w2_ref[...]                     # (1, 2H) VPU multiply
        inv_s = jnp.float32(inv_seq)
        m_sign = jnp.sum(prod[:, :hidden_dim], axis=-1, keepdims=True) * inv_s + b2_ref[:, 0:1]
        m_abs = jnp.sum(prod[:, hidden_dim:], axis=-1, keepdims=True) * inv_s + b2_ref[:, 1:2]
        rows = jnp.concatenate([m_sign, m_abs], axis=0)       # (2, 1)
        o_ref[...] = jnp.broadcast_to(rows[None], o_ref.shape)  # lane-dense broadcast store


def _vmem_limit_bytes():
    """Generation-aware scoped-VMEM request (75% of capacity, capped, with headroom)."""
    cap = None
    try:
        cap = getattr(pltpu.get_tpu_info(), "vmem_capacity_bytes", None)
    except Exception:
        cap = None
    if not cap:
        cap = 64 * 1024 * 1024           # conservative (v7x-sized) fallback
    return int(min(cap * 3 // 4, 100 * 1024 * 1024))


def _pick_tile_rows(seq_len, embed_dim, out_dim, x_itemsize, vmem_limit, max_tile_rows):
    """Largest row tile that divides S, is a multiple of 8, and fits the VMEM budget."""
    # Budget ~40% of the scoped limit for the double-buffered x tile + f32 xn/h/g intermediates;
    # the remainder covers the resident params and compiler scratch.
    per_row = 2 * embed_dim * x_itemsize + 4 * embed_dim + 8 * out_dim
    row_cap = max(8, int(vmem_limit * 0.4) // max(per_row, 1))
    cap = min(seq_len, max_tile_rows, row_cap)
    for cand in range(int(cap), 7, -1):
        if seq_len % cand == 0 and cand % 8 == 0:
            return cand
    return None


def _param_spec(shape, single_buffer):
    """BlockSpec for a VMEM-resident parameter (constant block index)."""
    index_map = lambda b, t: (0,) * len(shape)
    if single_buffer and hasattr(pl, "Buffered"):
        try:
            # No need to double-buffer blocks whose index never changes.
            return pl.BlockSpec(shape, index_map, pipeline_mode=pl.Buffered(1))
        except TypeError:
            pass
    return pl.BlockSpec(shape, index_map)


def real_tail(x, params, *, matmul_dtype=jnp.bfloat16, x_dtype=None,
              approximate_gelu=True, max_tile_rows=1024):
    """RealTail forward. x: (B, S, E). Returns (B,) float32.

    matmul_dtype:     MXU operand dtype for the fused first Linear (f32 accumulation always).
    x_dtype:          optional dtype for the HBM-streamed activations (jnp.bfloat16 halves the
                      HBM traffic of the only streamed operand).
    approximate_gelu: tanh GELU (EUP-routed) if True; exact erf GELU if False.
    """
    B, S, E = x.shape
    H = params["w1"].shape[-1]
    H2 = 2 * H

    # ---- trace-time parameter folding / packing (plain XLA ops in the wrapper) ----
    gamma, beta = params["gamma"], params["beta"]            # (2, E)
    w1, b1 = params["w1"], params["b1"]                      # (2, E, H), (2, H)
    w2, b2 = params["w2"], params["b2"]                      # (2, H, 1), (2, 1)

    w1f = gamma[:, :, None] * w1                             # fold LayerNorm scale into W1
    b1f = jnp.einsum("te,teh->th", beta, w1,
                     precision=lax.Precision.HIGHEST) + b1   # fold LayerNorm shift into b1
    w1_cat = jnp.concatenate([w1f[0], w1f[1]], axis=1).astype(matmul_dtype)          # (E, 2H)
    b1_cat = jnp.concatenate([b1f[0], b1f[1]], axis=0)[None, :].astype(jnp.float32)  # (1, 2H)
    w2_row = jnp.concatenate([w2[0, :, 0], w2[1, :, 0]], axis=0)[None, :].astype(jnp.float32)
    b2_row = jnp.concatenate([b2[0], b2[1]], axis=0)[None, :].astype(jnp.float32)    # (1, 2)
    # TODO(synk): pad each head's H to a multiple of 128 (zero w2 columns) when H is badly
    # unaligned with the 256-wide v6e/v7x MXU.

    # Flatten (B, S, E) -> (B*S, E) in the wrapper (free in HBM; avoids in-kernel reshape).
    x2 = x.reshape(B * S, E)
    if x_dtype is not None:
        x2 = x2.astype(x_dtype)

    vmem_limit = _vmem_limit_bytes()
    tm = _pick_tile_rows(S, E, H2, jnp.dtype(x2.dtype).itemsize, vmem_limit, max_tile_rows)
    # TODO(synk): seq lengths that are not a multiple of 8 need a padded/ragged tile path, and
    # very short S would benefit from row tiles spanning several whole sequences.
    assert tm is not None, "RealTail Pallas kernel requires seq_len to be a multiple of 8"
    tiles_per_batch = S // tm

    kernel = functools.partial(_real_tail_kernel, hidden_dim=H, inv_seq=1.0 / S,
                               approximate_gelu=approximate_gelu)

    def _run(single_buffer_params):
        grid_spec = pltpu.PrefetchScalarGridSpec(
            num_scalar_prefetch=0,
            grid=(B, tiles_per_batch),
            in_specs=[
                # x: one (tm, E) row tile per (batch, seq-tile) grid point (double-buffered DMA).
                pl.BlockSpec((tm, E), lambda b, t: (b * tiles_per_batch + t, 0)),
                # TODO(synk): for large E/2H, add an N-tile grid axis so W1 residency and the
                # (tm, 2H) f32 intermediates stay bounded in VMEM.
                _param_spec((E, H2), single_buffer_params),   # fused W1 (resident)
                _param_spec((1, H2), single_buffer_params),   # fused b1 (resident)
                _param_spec((1, H2), single_buffer_params),   # packed w2 row (resident)
                _param_spec((1, 2), single_buffer_params),    # packed b2 (resident)
            ],
            out_specs=pl.BlockSpec((1, 2, 128), lambda b, t: (b, 0, 0)),
            scratch_shapes=[pltpu.VMEM((1, H2), jnp.float32)],
        )
        return pl.pallas_call(
            kernel,
            out_shape=jax.ShapeDtypeStruct((B, 2, 128), jnp.float32),
            grid_spec=grid_spec,
            compiler_params=pltpu.CompilerParams(
                # Batch axis shards across TensorCores (v7x megacore); seq-tile axis reduces.
                dimension_semantics=("parallel", "arbitrary"),
                vmem_limit_bytes=vmem_limit,
            ),
        )(x2, w1_cat, b1_cat, w2_row, b2_row)

    try:
        out = _run(True)
    except Exception:
        # Fallback if this jax version rejects single-buffered auto-pipelined inputs.
        out = _run(False)

    # O(B)-scalar epilogue: combine the two heads exactly as the PyTorch module does.
    return jnp.cos(out[:, 0, 0]) * jnp.exp(out[:, 1, 0])


def init_params(key, embedding_dim, hidden_dim):
    """Deterministic synthetic parameters for both WaveTail heads (stacked on axis 0)."""
    ks = jax.random.split(key, 6)
    scale1 = 1.0 / math.sqrt(embedding_dim)
    scale2 = 1.0 / math.sqrt(hidden_dim)
    return {
        "gamma": jnp.ones((2, embedding_dim), jnp.float32)
        + 0.01 * jax.random.normal(ks[0], (2, embedding_dim), jnp.float32),
        "beta": 0.01 * jax.random.normal(ks[1], (2, embedding_dim), jnp.float32),
        "w1": scale1 * jax.random.normal(ks[2], (2, embedding_dim, hidden_dim), jnp.float32),
        "b1": scale1 * jax.random.normal(ks[3], (2, hidden_dim), jnp.float32),
        "w2": scale2 * jax.random.normal(ks[4], (2, hidden_dim, 1), jnp.float32),
        "b2": scale2 * jax.random.normal(ks[5], (2, 1), jnp.float32),
    }


def real_tail_reference(x, params, *, approximate_gelu=False):
    """Pure-JAX reference matching the PyTorch module (exact erf GELU by default)."""
    def gelu(h):
        if approximate_gelu:
            c = math.sqrt(2.0 / math.pi)
            return 0.5 * h * (1.0 + jnp.tanh(c * (h + 0.044715 * h ** 3)))
        return 0.5 * h * (1.0 + lax.erf(h / math.sqrt(2.0)))

    def wave_tail(t):
        mu = jnp.mean(x, axis=-1, keepdims=True)
        var = jnp.mean((x - mu) ** 2, axis=-1, keepdims=True)
        xn = (x - mu) / jnp.sqrt(var + 1e-5)
        xn = xn * params["gamma"][t] + params["beta"][t]
        h = jnp.dot(xn, params["w1"][t], precision=lax.Precision.HIGHEST) + params["b1"][t]
        g = gelu(h)
        y = (jnp.dot(g, params["w2"][t], precision=lax.Precision.HIGHEST)
             + params["b2"][t])[..., 0]                       # (B, S) after Flatten(-2)
        return jnp.mean(y, axis=-1)                           # (B,)

    return jnp.cos(wave_tail(0)) * jnp.exp(wave_tail(1))


if __name__ == "__main__":
    B, S, E, H = 2, 8, 32, 32
    key = jax.random.PRNGKey(0)
    kx, kp = jax.random.split(key)
    x = jax.random.normal(kx, (B, S, E), jnp.float32)
    params = init_params(kp, E, H)

    ref_exact = real_tail_reference(x, params)                           # erf GELU (PyTorch default)
    ref_tanh = real_tail_reference(x, params, approximate_gelu=True)     # tanh GELU

    # f32 MXU operands + tanh GELU: tight structural check of the kernel plumbing.
    out_f32 = jax.block_until_ready(real_tail(x, params, matmul_dtype=jnp.float32))
    assert out_f32.shape == (B,)
    assert jnp.allclose(out_f32, ref_tanh, atol=1e-3, rtol=1e-3), (out_f32, ref_tanh)
    assert jnp.allclose(out_f32, ref_exact, atol=5e-2, rtol=5e-2), (out_f32, ref_exact)

    # Default fast path: bf16 MXU operands with f32 accumulation.
    out_fast = jax.block_until_ready(real_tail(x, params))
    assert out_fast.shape == (B,)
    assert jnp.allclose(out_fast, ref_exact, atol=5e-2, rtol=5e-2), (out_fast, ref_exact)

    # bf16-streamed x (halves HBM traffic of the only streamed operand).
    out_stream = jax.block_until_ready(real_tail(x, params, x_dtype=jnp.bfloat16))
    assert jnp.allclose(out_stream, ref_exact, atol=5e-2, rtol=5e-2), (out_stream, ref_exact)

    print("KERNEL_OK")
</pallas_src>

<mosaic_0001>
module attributes {stable_mosaic.version = 11 : i64} {
  func.func @_real_tail_kernel(%arg0: i32, %arg1: i32, %arg2: memref<8x32xf32, #tpu.memory_space<vmem>>, %arg3: memref<32x64xf32, #tpu.memory_space<vmem>>, %arg4: memref<1x64xf32, #tpu.memory_space<vmem>>, %arg5: memref<1x64xf32, #tpu.memory_space<vmem>>, %arg6: memref<1x2xf32, #tpu.memory_space<vmem>>, %arg7: memref<1x2x128xf32, #tpu.memory_space<vmem>>, %arg8: memref<1x64xf32, #tpu.memory_space<vmem>>) attributes {dimension_semantics = [#tpu.dimension_semantics<parallel>, #tpu.dimension_semantics<arbitrary>], iteration_bounds = array<i64: 2, 1>, scalar_prefetch = 0 : i64, scratch_operands = 1 : i64, tpu.core_type = #tpu.core_type<tc>, window_params = [{transform_indices = @transform_0, window_bounds = array<i64: 8, 32>}, {pipeline_mode = #tpu.pipeline_mode<synchronous>, transform_indices = @transform_1, window_bounds = array<i64: 32, 64>}, {pipeline_mode = #tpu.pipeline_mode<synchronous>, transform_indices = @transform_2, window_bounds = array<i64: 1, 64>}, {pipeline_mode = #tpu.pipeline_mode<synchronous>, transform_indices = @transform_3, window_bounds = array<i64: 1, 64>}, {pipeline_mode = #tpu.pipeline_mode<synchronous>, transform_indices = @transform_4, window_bounds = array<i64: 1, 2>}, {transform_indices = @transform_5, window_bounds = array<i64: 1, 2, 128>}]} {
    %c0 = arith.constant 0 : index
    %c0_0 = arith.constant 0 : index
    %0 = vector.load %arg2[%c0, %c0_0] : memref<8x32xf32, #tpu.memory_space<vmem>>, vector<8x32xf32>
    %cst = arith.constant dense<0.000000e+00> : vector<8xf32>
    %1 = vector.multi_reduction <add>, %0, %cst [1] : vector<8x32xf32> to vector<8xf32>
    %2 = vector.shape_cast %1 : vector<8xf32> to vector<8x1xf32>
    %cst_1 = arith.constant 3.200000e+01 : f32
    %3 = vector.broadcast %cst_1 : f32 to vector<8x1xf32>
    %4 = arith.divf %2, %3 : vector<8x1xf32>
    %5 = arith.mulf %0, %0 : vector<8x32xf32>
    %cst_2 = arith.constant dense<0.000000e+00> : vector<8xf32>
    %6 = vector.multi_reduction <add>, %5, %cst_2 [1] : vector<8x32xf32> to vector<8xf32>
    %7 = vector.shape_cast %6 : vector<8xf32> to vector<8x1xf32>
    %cst_3 = arith.constant 3.200000e+01 : f32
    %8 = vector.broadcast %cst_3 : f32 to vector<8x1xf32>
    %9 = arith.divf %7, %8 : vector<8x1xf32>
    %10 = arith.mulf %4, %4 : vector<8x1xf32>
    %11 = arith.subf %9, %10 : vector<8x1xf32>
    %cst_4 = arith.constant 0.000000e+00 : f32
    %12 = vector.broadcast %cst_4 : f32 to vector<8x1xf32>
    %13 = arith.maximumf %11, %12 : vector<8x1xf32>
    %14 = vector.broadcast %4 : vector<8x1xf32> to vector<8x32xf32>
    %15 = arith.subf %0, %14 : vector<8x32xf32>
    %cst_5 = arith.constant 9.99999974E-6 : f32
    %16 = vector.broadcast %cst_5 : f32 to vector<8x1xf32>
    %17 = arith.addf %13, %16 : vector<8x1xf32>
    %18 = math.rsqrt %17 : vector<8x1xf32>
    %19 = vector.broadcast %18 : vector<8x1xf32> to vector<8x32xf32>
    %20 = arith.mulf %15, %19 : vector<8x32xf32>
    %c0_6 = arith.constant 0 : index
    %c0_7 = arith.constant 0 : index
    %21 = vector.load %arg3[%c0_6, %c0_7] : memref<32x64xf32, #tpu.memory_space<vmem>>, vector<32x64xf32>
    %cst_8 = arith.constant dense<0.000000e+00> : vector<8x64xf32>
    %22 = tpu.matmul %20, %21, %cst_8 {dimension_numbers = #tpu.dot_dimension_numbers<[1], [0], [0], [1], [0, 0, 1, 1], [], []>} : vector<8x32xf32>, vector<32x64xf32>, vector<8x64xf32> -> vector<8x64xf32>
    %c0_9 = arith.constant 0 : index
    %c0_10 = arith.constant 0 : index
    %23 = vector.load %arg4[%c0_9, %c0_10] : memref<1x64xf32, #tpu.memory_space<vmem>>, vector<1x64xf32>
    %24 = vector.broadcast %23 : vector<1x64xf32> to vector<8x64xf32>
    %25 = arith.addf %22, %24 : vector<8x64xf32>
    %cst_11 = arith.constant 5.000000e-01 : f32
    %26 = vector.broadcast %cst_11 : f32 to vector<8x64xf32>
    %27 = arith.mulf %26, %25 : vector<8x64xf32>
    %cst_12 = arith.constant 4.471500e-02 : f32
    %28 = vector.broadcast %cst_12 : f32 to vector<8x64xf32>
    %29 = arith.mulf %28, %25 : vector<8x64xf32>
    %30 = arith.mulf %29, %25 : vector<8x64xf32>
    %31 = arith.mulf %30, %25 : vector<8x64xf32>
    %32 = arith.addf %25, %31 : vector<8x64xf32>
    %cst_13 = arith.constant 0.797884583 : f32
    %33 = vector.broadcast %cst_13 : f32 to vector<8x64xf32>
    %34 = arith.mulf %33, %32 : vector<8x64xf32>
    %35 = math.tanh %34 : vector<8x64xf32>
    %cst_14 = arith.constant 1.000000e+00 : f32
    %36 = vector.broadcast %cst_14 : f32 to vector<8x64xf32>
    %37 = arith.addf %36, %35 : vector<8x64xf32>
    %38 = arith.mulf %27, %37 : vector<8x64xf32>
    %cst_15 = arith.constant dense<0.000000e+00> : vector<64xf32>
    %39 = vector.multi_reduction <add>, %38, %cst_15 [0] : vector<8x64xf32> to vector<64xf32>
    %40 = vector.shape_cast %39 : vector<64xf32> to vector<1x64xf32>
    %c0_i32 = arith.constant 0 : i32
    %41 = arith.cmpi eq, %arg1, %c0_i32 : i32
    %42 = arith.extui %41 : i1 to i32
    %c0_i32_16 = arith.constant 0 : i32
    %43 = arith.cmpi ne, %42, %c0_i32_16 : i32
    scf.if %43 {
      %c0_21 = arith.constant 0 : index
      %c0_22 = arith.constant 0 : index
      %50 = vector.load %arg8[%c0_21, %c0_22] : memref<1x64xf32, #tpu.memory_space<vmem>>, vector<1x64xf32>
      tpu.vector_store %arg8[%c0_21, %c0_22], %40 {strides = array<i32>} : memref<1x64xf32, #tpu.memory_space<vmem>>, vector<1x64xf32>,
    } else {
    }
    %c0_i32_17 = arith.constant 0 : i32
    %44 = arith.cmpi sgt, %arg1, %c0_i32_17 : i32
    %45 = arith.extui %44 : i1 to i32
    %c0_i32_18 = arith.constant 0 : i32
    %46 = arith.cmpi ne, %45, %c0_i32_18 : i32
    scf.if %46 {
      %c0_21 = arith.constant 0 : index
      %c0_22 = arith.constant 0 : index
      %50 = vector.load %arg8[%c0_21, %c0_22] : memref<1x64xf32, #tpu.memory_space<vmem>>, vector<1x64xf32>
      %51 = arith.addf %50, %40 : vector<1x64xf32>
      %c0_23 = arith.constant 0 : index
      %c0_24 = arith.constant 0 : index
      %52 = vector.load %arg8[%c0_23, %c0_24] : memref<1x64xf32, #tpu.memory_space<vmem>>, vector<1x64xf32>
      tpu.vector_store %arg8[%c0_23, %c0_24], %51 {strides = array<i32>} : memref<1x64xf32, #tpu.memory_space<vmem>>, vector<1x64xf32>,
    } else {
    }
    %c0_i32_19 = arith.constant 0 : i32
    %47 = arith.cmpi eq, %arg1, %c0_i32_19 : i32
    %48 = arith.extui %47 : i1 to i32
    %c0_i32_20 = arith.constant 0 : i32
    %49 = arith.cmpi ne, %48, %c0_i32_20 : i32
    scf.if %49 {
      %c0_21 = arith.constant 0 : index
      %c0_22 = arith.constant 0 : index
      %50 = vector.load %arg8[%c0_21, %c0_22] : memref<1x64xf32, #tpu.memory_space<vmem>>, vector<1x64xf32>
      %c0_23 = arith.constant 0 : index
      %c0_24 = arith.constant 0 : index
      %51 = vector.load %arg5[%c0_23, %c0_24] : memref<1x64xf32, #tpu.memory_space<vmem>>, vector<1x64xf32>
      %52 = arith.mulf %50, %51 : vector<1x64xf32>
      %53 = vector.extract_strided_slice %52 {offsets = [0, 0], sizes = [1, 32], strides = [1, 1]} : vector<1x64xf32> to vector<1x32xf32>
      %cst_25 = arith.constant dense<0.000000e+00> : vector<1xf32>
      %54 = vector.multi_reduction <add>, %53, %cst_25 [1] : vector<1x32xf32> to vector<1xf32>
      %55 = vector.shape_cast %54 : vector<1xf32> to vector<1x1xf32>
      %cst_26 = arith.constant 1.250000e-01 : f32
      %56 = vector.broadcast %cst_26 : f32 to vector<1x1xf32>
      %57 = arith.mulf %55, %56 : vector<1x1xf32>
      %c0_27 = arith.constant 0 : index
      %c0_28 = arith.constant 0 : index
      %58 = vector.load %arg6[%c0_27, %c0_28] : memref<1x2xf32, #tpu.memory_space<vmem>>, vector<1x1xf32>
      %59 = arith.addf %57, %58 : vector<1x1xf32>
      %60 = vector.extract_strided_slice %52 {offsets = [0, 32], sizes = [1, 32], strides = [1, 1]} : vector<1x64xf32> to vector<1x32xf32>
      %cst_29 = arith.constant dense<0.000000e+00> : vector<1xf32>
      %61 = vector.multi_reduction <add>, %60, %cst_29 [1] : vector<1x32xf32> to vector<1xf32>
      %62 = vector.shape_cast %61 : vector<1xf32> to vector<1x1xf32>
      %cst_30 = arith.constant 1.250000e-01 : f32
      %63 = vector.broadcast %cst_30 : f32 to vector<1x1xf32>
      %64 = arith.mulf %62, %63 : vector<1x1xf32>
      %c0_31 = arith.constant 0 : index
      %c1 = arith.constant 1 : index
      %65 = vector.load %arg6[%c0_31, %c1] : memref<1x2xf32, #tpu.memory_space<vmem>>, vector<1x1xf32>
      %66 = arith.addf %64, %65 : vector<1x1xf32>
      %67 = tpu.concatenate %59, %66 in 0 : vector<1x1xf32>, vector<1x1xf32> -> vector<2x1xf32>
      %68 = vector.shape_cast %67 : vector<2x1xf32> to vector<1x2x1xf32>
      %69 = vector.shape_cast %68 : vector<1x2x1xf32> to vector<1x2x1xf32>
      %70 = vector.broadcast %69 : vector<1x2x1xf32> to vector<1x2x128xf32>
      %c0_32 = arith.constant 0 : index
      %c0_33 = arith.constant 0 : index
      %c0_34 = arith.constant 0 : index
      %71 = vector.load %arg7[%c0_32, %c0_33, %c0_34] : memref<1x2x128xf32, #tpu.memory_space<vmem>>, vector<1x2x128xf32>
      tpu.vector_store %arg7[%c0_32, %c0_33, %c0_34], %70 {strides = array<i32>} : memref<1x2x128xf32, #tpu.memory_space<vmem>>, vector<1x2x128xf32>,
    } else {
    }
    return
  }
  func.func @transform_0(%arg0: i32, %arg1: i32) -> (i32, i32) {
    %c1_i32 = arith.constant 1 : i32
    %0 = arith.muli %arg0, %c1_i32 : i32
    %1 = arith.addi %0, %arg1 : i32
    %c0_i32 = arith.constant 0 : i32
    %c0_i32_0 = arith.constant 0 : i32
    return %1, %c0_i32 : i32, i32
  }
  func.func @transform_1(%arg0: i32, %arg1: i32) -> (i32, i32) {
    %c0_i32 = arith.constant 0 : i32
    %c0_i32_0 = arith.constant 0 : i32
    %c0_i32_1 = arith.constant 0 : i32
    return %c0_i32, %c0_i32_0 : i32, i32
  }
  func.func @transform_2(%arg0: i32, %arg1: i32) -> (i32, i32) {
    %c0_i32 = arith.constant 0 : i32
    %c0_i32_0 = arith.constant 0 : i32
    %c0_i32_1 = arith.constant 0 : i32
    return %c0_i32, %c0_i32_0 : i32, i32
  }
  func.func @transform_3(%arg0: i32, %arg1: i32) -> (i32, i32) {
    %c0_i32 = arith.constant 0 : i32
    %c0_i32_0 = arith.constant 0 : i32
    %c0_i32_1 = arith.constant 0 : i32
    return %c0_i32, %c0_i32_0 : i32, i32
  }
  func.func @transform_4(%arg0: i32, %arg1: i32) -> (i32, i32) {
    %c0_i32 = arith.constant 0 : i32
    %c0_i32_0 = arith.constant 0 : i32
    %c0_i32_1 = arith.constant 0 : i32
    return %c0_i32, %c0_i32_0 : i32, i32
  }
  func.func @transform_5(%arg0: i32, %arg1: i32) -> (i32, i32, i32) {
    %c0_i32 = arith.constant 0 : i32
    %c0_i32_0 = arith.constant 0 : i32
    %c0_i32_1 = arith.constant 0 : i32
    return %arg0, %c0_i32, %c0_i32_0 : i32, i32, i32
  }
}

module attributes {stable_mosaic.version = 11 : i64} {
  func.func @_real_tail_kernel(%arg0: i32, %arg1: i32, %arg2: memref<8x32xf32, #tpu.memory_space<vmem>>, %arg3: memref<32x64xf32, #tpu.memory_space<vmem>>, %arg4: memref<1x64xf32, #tpu.memory_space<vmem>>, %arg5: memref<1x64xf32, #tpu.memory_space<vmem>>, %arg6: memref<1x2xf32, #tpu.memory_space<vmem>>, %arg7: memref<1x2x128xf32, #tpu.memory_space<vmem>>, %arg8: memref<1x64xf32, #tpu.memory_space<vmem>>) attributes {dimension_semantics = [#tpu.dimension_semantics<parallel>, #tpu.dimension_semantics<arbitrary>], iteration_bounds = array<i64: 2, 1>, scalar_prefetch = 0 : i64, scratch_operands = 1 : i64, tpu.core_type = #tpu.core_type<tc>, window_params = [{transform_indices = @transform_0, window_bounds = array<i64: 8, 32>}, {pipeline_mode = #tpu.pipeline_mode<synchronous>, transform_indices = @transform_1, window_bounds = array<i64: 32, 64>}, {pipeline_mode = #tpu.pipeline_mode<synchronous>, transform_indices = @transform_2, window_bounds = array<i64: 1, 64>}, {pipeline_mode = #tpu.pipeline_mode<synchronous>, transform_indices = @transform_3, window_bounds = array<i64: 1, 64>}, {pipeline_mode = #tpu.pipeline_mode<synchronous>, transform_indices = @transform_4, window_bounds = array<i64: 1, 2>}, {transform_indices = @transform_5, window_bounds = array<i64: 1, 2, 128>}]} {
    %c0 = arith.constant 0 : index
    %c0_0 = arith.constant 0 : index
    %0 = vector.load %arg2[%c0, %c0_0] : memref<8x32xf32, #tpu.memory_space<vmem>>, vector<8x32xf32>
    %cst = arith.constant dense<0.000000e+00> : vector<8xf32>
    %1 = vector.multi_reduction <add>, %0, %cst [1] : vector<8x32xf32> to vector<8xf32>
    %2 = vector.shape_cast %1 : vector<8xf32> to vector<8x1xf32>
    %cst_1 = arith.constant 3.200000e+01 : f32
    %3 = vector.broadcast %cst_1 : f32 to vector<8x1xf32>
    %4 = arith.divf %2, %3 : vector<8x1xf32>
    %5 = arith.mulf %0, %0 : vector<8x32xf32>
    %cst_2 = arith.constant dense<0.000000e+00> : vector<8xf32>
    %6 = vector.multi_reduction <add>, %5, %cst_2 [1] : vector<8x32xf32> to vector<8xf32>
    %7 = vector.shape_cast %6 : vector<8xf32> to vector<8x1xf32>
    %cst_3 = arith.constant 3.200000e+01 : f32
    %8 = vector.broadcast %cst_3 : f32 to vector<8x1xf32>
    %9 = arith.divf %7, %8 : vector<8x1xf32>
    %10 = arith.mulf %4, %4 : vector<8x1xf32>
    %11 = arith.subf %9, %10 : vector<8x1xf32>
    %cst_4 = arith.constant 0.000000e+00 : f32
    %12 = vector.broadcast %cst_4 : f32 to vector<8x1xf32>
    %13 = arith.maximumf %11, %12 : vector<8x1xf32>
    %14 = vector.broadcast %4 : vector<8x1xf32> to vector<8x32xf32>
    %15 = arith.subf %0, %14 : vector<8x32xf32>
    %cst_5 = arith.constant 9.99999974E-6 : f32
    %16 = vector.broadcast %cst_5 : f32 to vector<8x1xf32>
    %17 = arith.addf %13, %16 : vector<8x1xf32>
    %18 = math.rsqrt %17 : vector<8x1xf32>
    %19 = vector.broadcast %18 : vector<8x1xf32> to vector<8x32xf32>
    %20 = arith.mulf %15, %19 : vector<8x32xf32>
    %c0_6 = arith.constant 0 : index
    %c0_7 = arith.constant 0 : index
    %21 = vector.load %arg3[%c0_6, %c0_7] : memref<32x64xf32, #tpu.memory_space<vmem>>, vector<32x64xf32>
    %cst_8 = arith.constant dense<0.000000e+00> : vector<8x64xf32>
    %22 = tpu.matmul %20, %21, %cst_8 {dimension_numbers = #tpu.dot_dimension_numbers<[1], [0], [0], [1], [0, 0, 1, 1], [], []>} : vector<8x32xf32>, vector<32x64xf32>, vector<8x64xf32> -> vector<8x64xf32>
    %c0_9 = arith.constant 0 : index
    %c0_10 = arith.constant 0 : index
    %23 = vector.load %arg4[%c0_9, %c0_10] : memref<1x64xf32, #tpu.memory_space<vmem>>, vector<1x64xf32>
    %24 = vector.broadcast %23 : vector<1x64xf32> to vector<8x64xf32>
    %25 = arith.addf %22, %24 : vector<8x64xf32>
    %cst_11 = arith.constant 5.000000e-01 : f32
    %26 = vector.broadcast %cst_11 : f32 to vector<8x64xf32>
    %27 = arith.mulf %26, %25 : vector<8x64xf32>
    %cst_12 = arith.constant 4.471500e-02 : f32
    %28 = vector.broadcast %cst_12 : f32 to vector<8x64xf32>
    %29 = arith.mulf %28, %25 : vector<8x64xf32>
    %30 = arith.mulf %29, %25 : vector<8x64xf32>
    %31 = arith.mulf %30, %25 : vector<8x64xf32>
    %32 = arith.addf %25, %31 : vector<8x64xf32>
    %cst_13 = arith.constant 0.797884583 : f32
    %33 = vector.broadcast %cst_13 : f32 to vector<8x64xf32>
    %34 = arith.mulf %33, %32 : vector<8x64xf32>
    %35 = math.tanh %34 : vector<8x64xf32>
    %cst_14 = arith.constant 1.000000e+00 : f32
    %36 = vector.broadcast %cst_14 : f32 to vector<8x64xf32>
    %37 = arith.addf %36, %35 : vector<8x64xf32>
    %38 = arith.mulf %27, %37 : vector<8x64xf32>
    %cst_15 = arith.constant dense<0.000000e+00> : vector<64xf32>
    %39 = vector.multi_reduction <add>, %38, %cst_15 [0] : vector<8x64xf32> to vector<64xf32>
    %40 = vector.shape_cast %39 : vector<64xf32> to vector<1x64xf32>
    %c0_i32 = arith.constant 0 : i32
    %41 = arith.cmpi eq, %arg1, %c0_i32 : i32
    %42 = arith.extui %41 : i1 to i32
    %c0_i32_16 = arith.constant 0 : i32
    %43 = arith.cmpi ne, %42, %c0_i32_16 : i32
    scf.if %43 {
      %c0_21 = arith.constant 0 : index
      %c0_22 = arith.constant 0 : index
      %50 = vector.load %arg8[%c0_21, %c0_22] : memref<1x64xf32, #tpu.memory_space<vmem>>, vector<1x64xf32>
      tpu.vector_store %arg8[%c0_21, %c0_22], %40 {strides = array<i32>} : memref<1x64xf32, #tpu.memory_space<vmem>>, vector<1x64xf32>,
    } else {
    }
    %c0_i32_17 = arith.constant 0 : i32
    %44 = arith.cmpi sgt, %arg1, %c0_i32_17 : i32
    %45 = arith.extui %44 : i1 to i32
    %c0_i32_18 = arith.constant 0 : i32
    %46 = arith.cmpi ne, %45, %c0_i32_18 : i32
    scf.if %46 {
      %c0_21 = arith.constant 0 : index
      %c0_22 = arith.constant 0 : index
      %50 = vector.load %arg8[%c0_21, %c0_22] : memref<1x64xf32, #tpu.memory_space<vmem>>, vector<1x64xf32>
      %51 = arith.addf %50, %40 : vector<1x64xf32>
      %c0_23 = arith.constant 0 : index
      %c0_24 = arith.constant 0 : index
      %52 = vector.load %arg8[%c0_23, %c0_24] : memref<1x64xf32, #tpu.memory_space<vmem>>, vector<1x64xf32>
      tpu.vector_store %arg8[%c0_23, %c0_24], %51 {strides = array<i32>} : memref<1x64xf32, #tpu.memory_space<vmem>>, vector<1x64xf32>,
    } else {
    }
    %c0_i32_19 = arith.constant 0 : i32
    %47 = arith.cmpi eq, %arg1, %c0_i32_19 : i32
    %48 = arith.extui %47 : i1 to i32
    %c0_i32_20 = arith.constant 0 : i32
    %49 = arith.cmpi ne, %48, %c0_i32_20 : i32
    scf.if %49 {
      %c0_21 = arith.constant 0 : index
      %c0_22 = arith.constant 0 : index
      %50 = vector.load %arg8[%c0_21, %c0_22] : memref<1x64xf32, #tpu.memory_space<vmem>>, vector<1x64xf32>
      %c0_23 = arith.constant 0 : index
      %c0_24 = arith.constant 0 : index
      %51 = vector.load %arg5[%c0_23, %c0_24] : memref<1x64xf32, #tpu.memory_space<vmem>>, vector<1x64xf32>
      %52 = arith.mulf %50, %51 : vector<1x64xf32>
      %53 = vector.extract_strided_slice %52 {offsets = [0, 0], sizes = [1, 32], strides = [1, 1]} : vector<1x64xf32> to vector<1x32xf32>
      %cst_25 = arith.constant dense<0.000000e+00> : vector<1xf32>
      %54 = vector.multi_reduction <add>, %53, %cst_25 [1] : vector<1x32xf32> to vector<1xf32>
      %55 = vector.shape_cast %54 : vector<1xf32> to vector<1x1xf32>
      %cst_26 = arith.constant 1.250000e-01 : f32
      %56 = vector.broadcast %cst_26 : f32 to vector<1x1xf32>
      %57 = arith.mulf %55, %56 : vector<1x1xf32>
      %c0_27 = arith.constant 0 : index
      %c0_28 = arith.constant 0 : index
      %58 = vector.load %arg6[%c0_27, %c0_28] : memref<1x2xf32, #tpu.memory_space<vmem>>, vector<1x1xf32>
      %59 = arith.addf %57, %58 : vector<1x1xf32>
      %60 = vector.extract_strided_slice %52 {offsets = [0, 32], sizes = [1, 32], strides = [1, 1]} : vector<1x64xf32> to vector<1x32xf32>
      %cst_29 = arith.constant dense<0.000000e+00> : vector<1xf32>
      %61 = vector.multi_reduction <add>, %60, %cst_29 [1] : vector<1x32xf32> to vector<1xf32>
      %62 = vector.shape_cast %61 : vector<1xf32> to vector<1x1xf32>
      %cst_30 = arith.constant 1.250000e-01 : f32
      %63 = vector.broadcast %cst_30 : f32 to vector<1x1xf32>
      %64 = arith.mulf %62, %63 : vector<1x1xf32>
      %c0_31 = arith.constant 0 : index
      %c1 = arith.constant 1 : index
      %65 = vector.load %arg6[%c0_31, %c1] : memref<1x2xf32, #tpu.memory_space<vmem>>, vector<1x1xf32>
      %66 = arith.addf %64, %65 : vector<1x1xf32>
      %67 = tpu.concatenate %59, %66 in 0 : vector<1x1xf32>, vector<1x1xf32> -> vector<2x1xf32>
      %68 = vector.shape_cast %67 : vector<2x1xf32> to vector<1x2x1xf32>
      %69 = vector.shape_cast %68 : vector<1x2x1xf32> to vector<1x2x1xf32>
      %70 = vector.broadcast %69 : vector<1x2x1xf32> to vector<1x2x128xf32>
      %c0_32 = arith.constant 0 : index
      %c0_33 = arith.constant 0 : index
      %c0_34 = arith.constant 0 : index
      %71 = vector.load %arg7[%c0_32, %c0_33, %c0_34] : memref<1x2x128xf32, #tpu.memory_space<vmem>>, vector<1x2x128xf32>
      tpu.vector_store %arg7[%c0_32, %c0_33, %c0_34], %70 {strides = array<i32>} : memref<1x2x128xf32, #tpu.memory_space<vmem>>, vector<1x2x128xf32>,
    } else {
    }
    return
  }
  func.func @transform_0(%arg0: i32, %arg1: i32) -> (i32, i32) {
    %c1_i32 = arith.constant 1 : i32
    %0 = arith.muli %arg0, %c1_i32 : i32
    %1 = arith.addi %0, %arg1 : i32
    %c0_i32 = arith.constant 0 : i32
    %c0_i32_0 = arith.constant 0 : i32
    return %1, %c0_i32 : i32, i32
  }
  func.func @transform_1(%arg0: i32, %arg1: i32) -> (i32, i32) {
    %c0_i32 = arith.constant 0 : i32
    %c0_i32_0 = arith.constant 0 : i32
    %c0_i32_1 = arith.constant 0 : i32
    return %c0_i32, %c0_i32_0 : i32, i32
  }
  func.func @transform_2(%arg0: i32, %arg1: i32) -> (i32, i32) {
    %c0_i32 = arith.constant 0 : i32
    %c0_i32_0 = arith.constant 0 : i32
    %c0_i32_1 = arith.constant 0 : i32
    return %c0_i32, %c0_i32_0 : i32, i32
  }
  func.func @transform_3(%arg0: i32, %arg1: i32) -> (i32, i32) {
    %c0_i32 = arith.constant 0 : i32
    %c0_i32_0 = arith.constant 0 : i32
    %c0_i32_1 = arith.constant 0 : i32
    return %c0_i32, %c0_i32_0 : i32, i32
  }
  func.func @transform_4(%arg0: i32, %arg1: i32) -> (i32, i32) {
    %c0_i32 = arith.constant 0 : i32
    %c0_i32_0 = arith.constant 0 : i32
    %c0_i32_1 = arith.constant 0 : i32
    return %c0_i32, %c0_i32_0 : i32, i32
  }
  func.func @transform_5(%arg0: i32, %arg1: i32) -> (i32, i32, i32) {
    %c0_i32 = arith.constant 0 : i32
    %c0_i32_0 = arith.constant 0 : i32
    %c0_i32_1 = arith.constant 0 : i32
    return %arg0, %c0_i32, %c0_i32_0 : i32, i32, i32
  }
}

</mosaic_0001>

<llo_original>
// kernel: tpu_custom_call.1
$region0: #{tpu_custom_call.1}
  #allocation0 [shape = 'u32[]', space=smem, size = 0x4, offset = 0x4, fixed_abs, tag = 'smem constant byte address 0x4 - core index']
  #allocation1 [shape = 'u32[144,128]{1,0:T(1,128)}', space=vmem, size = 0x12000, scoped, tag = 'internal scratch']
  #allocation2 [shape = 'f32[1,64]{1,0:T(1,128)}', space=vmem, size = 0x200, scoped, tag = 'scratch operand']
  %s0 = inlined_call_operand.hbm [shape: f32[16,32], index: 0, kind: input, shape index: {}]
  %s1 = inlined_call_operand.hbm [shape: f32[32,64], index: 1, kind: input, shape index: {}]
  %s2 = inlined_call_operand.vmem [shape: f32[1,64], index: 2, kind: input, shape index: {}]
  %s3 = inlined_call_operand.vmem [shape: f32[1,64], index: 3, kind: input, shape index: {}]
  %s4 = inlined_call_operand.vmem [shape: f32[1,2], index: 4, kind: input, shape index: {}]
  %s5 = inlined_call_operand.hbm [shape: f32[2,2,128], index: 5, kind: output, shape index: {}]
  %s6 = sld [smem:[#allocation0]]
  $region73: #{tpu_custom_call.1} parent=0
    _
  %s8 = ssub.s32 1, %s6
  %s9 = scalar_select 0, %s8, %s6
  $region1: #{tpu_custom_call.1} parent=0
    #allocation3 [shape = 'u8[8192]{0}', space=vmem, size = 0x2000, scoped, tag = 'input window, operand 0']
    #allocation4 [shape = 's32[2]{0}', space=sflag, size = 0x8, scoped, tag = 'scoped memory for tpu_custom_call.1']
    #allocation5 [shape = 's32[2]{0}', space=sflag, size = 0x8, scoped, tag = 'scoped memory for tpu_custom_call.1']
    #allocation6 [shape = 'u8[16384]{0}', space=vmem, size = 0x4000, scoped, tag = 'input window, operand 1, single buffered']
    #allocation7 [shape = 's32[1]{0}', space=sflag, size = 0x4, scoped, tag = 'scoped memory for tpu_custom_call.1']
    #allocation8 [shape = 'u8[2048]{0}', space=vmem, size = 0x800, scoped, tag = 'output window, operand 0']
    %10 = vsyncpa [#allocation4], 0
    %s11 = scalar_lea.sflag [#allocation4], 1
    %12 = vsyncpa %s11, 0
    %13 = vsyncpa [#allocation7], 0
    %14 = vsyncpa [#allocation5], 0
    %s15 = scalar_lea.sflag [#allocation5], 1
    %16 = vsyncpa %s15, 0
    loop: start=0, step=1, limit=4
    $region2: #{tpu_custom_call.1} parent=1 // loop_pre_header
      _
    $region3: #{tpu_custom_call.1} parent=1 // loop_header
      %s18 = sphi 0, %s22
      %p19 = scmp.ge.s32.totalorder %s18, 4
      %s25 = sphi 0, %s37
      %s26 = sphi 0, %s33
      %s27 = sphi 0, %s25
      %s28 = sphi 0, %s26
      %s29 = sphi 0, %s27
      %s30 = sphi 0, %s28
      %s42 = sphi 0, %s44
      %s45 = sphi 0, %s42
      %s46 = sphi 0, %s45
      %s62 = sphi 0, %s46
      %s66 = sphi 0, %s66
      %s68 = sphi 0, %s66
      %s69 = sphi 0, %s68
      %s83 = sphi 0, %s69
      %s87 = sphi 0, %s87
      %s89 = sphi 0, %s87
      %s90 = sphi 0, %s89
      %s104 = sphi 0, %s90
      %s108 = sphi 0, %s108
      %s110 = sphi 0, %s108
      %s111 = sphi 0, %s110
      %s125 = sphi 0, %s111
      %s129 = sphi 0, %s129
      %s131 = sphi 0, %s129
      %s132 = sphi 0, %s131
      %s146 = sphi 0, %s132
      %s152 = sphi 0, %s154
      %s155 = sphi 0, %s152
      %s156 = sphi 0, %s155
      %s172 = sphi 0, %s156
    $region4: #{tpu_custom_call.1} parent=1 // loop_header_branch
      %21 = sbr.rel (%p19) target = $region8
    $region5: #{tpu_custom_call.1} parent=1 // loop_body
      %s23 = ssub.s32 %s18, 1
      %s24 = ssub.s32 %s18, 2
      %s31 = sadd.s32 1, %s26
      %p32 = scmp.ge.s32.totalorder %s31, 1
      %s33 = scalar_select %p32, 0, %s31
      %s34 = sadd.s32 1, %s25
      %s35 = scalar_select %p32, %s34, %s25
      %p36 = scmp.ge.s32.totalorder %s35, 2
      %s37 = scalar_select %p36, 0, %s35
      %s38 = sadd.s32 %s25, %s26
      %s39 = sadd.s32 %s37, %s33
      %s40 = ssub.s32 %s38, %s39
      %p41 = scmp.eq.s32.totalorder %s40, 0
      %s43 = sadd.s32 %s42, 1
      %s44 = scalar_select %p41, %s42, %s43
      %p47 = pneg %p41
      %p48 = scmp.eq.s32.totalorder %s18, 1
      %p49 = por %p47, %p48
      %p50 = scmp.ne.s32.totalorder %s42, %s45
      %p51 = scmp.eq.s32.totalorder %s18, 0
      %p52 = por %p50, %p51
      %p53 = scmp.ne.s32.totalorder %s42, %s45
      %p54 = scmp.eq.s32.totalorder %s23, 1
      %p55 = por %p53, %p54
      %p56 = scmp.ne.s32.totalorder %s45, %s46
      %p57 = scmp.eq.s32.totalorder %s23, 0
      %p58 = por %p56, %p57
      %p59 = scmp.ne.s32.totalorder %s45, %s46
      %p60 = scmp.eq.s32.totalorder %s24, 1
      %p61 = por %p59, %p60
      %p63 = scmp.ne.s32.totalorder %s46, %s62
      %p64 = scmp.eq.s32.totalorder %s24, 0
      %p65 = por %p63, %p64
      %s67 = sadd.s32 %s66, 1
      %p70 = scmp.eq.s32.totalorder %s18, 1
      %p71 = scmp.ne.s32.totalorder %s66, %s68
      %p72 = scmp.eq.s32.totalorder %s18, 0
      %p73 = por %p71, %p72
      %p74 = scmp.ne.s32.totalorder %s66, %s68
      %p75 = scmp.eq.s32.totalorder %s23, 1
      %p76 = por %p74, %p75
      %p77 = scmp.ne.s32.totalorder %s68, %s69
      %p78 = scmp.eq.s32.totalorder %s23, 0
      %p79 = por %p77, %p78
      %p80 = scmp.ne.s32.totalorder %s68, %s69
      %p81 = scmp.eq.s32.totalorder %s24, 1
      %p82 = por %p80, %p81
      %p84 = scmp.ne.s32.totalorder %s69, %s83
      %p85 = scmp.eq.s32.totalorder %s24, 0
      %p86 = por %p84, %p85
      %s88 = sadd.s32 %s87, 1
      %p91 = scmp.eq.s32.totalorder %s18, 1
      %p92 = scmp.ne.s32.totalorder %s87, %s89
      %p93 = scmp.eq.s32.totalorder %s18, 0
      %p94 = por %p92, %p93
      %p95 = scmp.ne.s32.totalorder %s87, %s89
      %p96 = scmp.eq.s32.totalorder %s23, 1
      %p97 = por %p95, %p96
      %p98 = scmp.ne.s32.totalorder %s89, %s90
      %p99 = scmp.eq.s32.totalorder %s23, 0
      %p100 = por %p98, %p99
      %p101 = scmp.ne.s32.totalorder %s89, %s90
      %p102 = scmp.eq.s32.totalorder %s24, 1
      %p103 = por %p101, %p102
      %p105 = scmp.ne.s32.totalorder %s90, %s104
      %p106 = scmp.eq.s32.totalorder %s24, 0
      %p107 = por %p105, %p106
      %s109 = sadd.s32 %s108, 1
      %p112 = scmp.eq.s32.totalorder %s18, 1
      %p113 = scmp.ne.s32.totalorder %s108, %s110
      %p114 = scmp.eq.s32.totalorder %s18, 0
      %p115 = por %p113, %p114
      %p116 = scmp.ne.s32.totalorder %s108, %s110
      %p117 = scmp.eq.s32.totalorder %s23, 1
      %p118 = por %p116, %p117
      %p119 = scmp.ne.s32.totalorder %s110, %s111
      %p120 = scmp.eq.s32.totalorder %s23, 0
      %p121 = por %p119, %p120
      %p122 = scmp.ne.s32.totalorder %s110, %s111
      %p123 = scmp.eq.s32.totalorder %s24, 1
      %p124 = por %p122, %p123
      %p126 = scmp.ne.s32.totalorder %s111, %s125
      %p127 = scmp.eq.s32.totalorder %s24, 0
      %p128 = por %p126, %p127
      %s130 = sadd.s32 %s129, 1
      %p133 = scmp.eq.s32.totalorder %s18, 1
      %p134 = scmp.ne.s32.totalorder %s129, %s131
      %p135 = scmp.eq.s32.totalorder %s18, 0
      %p136 = por %p134, %p135
      %p137 = scmp.ne.s32.totalorder %s129, %s131
      %p138 = scmp.eq.s32.totalorder %s23, 1
      %p139 = por %p137, %p138
      %p140 = scmp.ne.s32.totalorder %s131, %s132
      %p141 = scmp.eq.s32.totalorder %s23, 0
      %p142 = por %p140, %p141
      %p143 = scmp.ne.s32.totalorder %s131, %s132
      %p144 = scmp.eq.s32.totalorder %s24, 1
      %p145 = por %p143, %p144
      %p147 = scmp.ne.s32.totalorder %s132, %s146
      %p148 = scmp.eq.s32.totalorder %s24, 0
      %p149 = por %p147, %p148
      %s150 = ssub.s32 %s25, %s37
      %p151 = scmp.eq.s32.totalorder %s150, 0
      %s153 = sadd.s32 %s152, 1
      %s154 = scalar_select %p151, %s152, %s153
      %p157 = pneg %p151
      %p158 = scmp.eq.s32.totalorder %s18, 1
      %p159 = por %p157, %p158
      %p160 = scmp.ne.s32.totalorder %s152, %s155
      %p161 = scmp.eq.s32.totalorder %s18, 0
      %p162 = por %p160, %p161
      %p163 = scmp.ne.s32.totalorder %s152, %s155
      %p164 = scmp.eq.s32.totalorder %s23, 1
      %p165 = por %p163, %p164
      %p166 = scmp.ne.s32.totalorder %s155, %s156
      %p167 = scmp.eq.s32.totalorder %s23, 0
      %p168 = por %p166, %p167
      %p169 = scmp.ne.s32.totalorder %s155, %s156
      %p170 = scmp.eq.s32.totalorder %s24, 1
      %p171 = por %p169, %p170
      %p173 = scmp.ne.s32.totalorder %s156, %s172
      %p174 = scmp.eq.s32.totalorder %s24, 0
      %p175 = por %p173, %p174
      %p176 = scmp.le.s32.totalorder 1, %s18
      %p177 = scmp.lt.s32.totalorder %s18, 3
      %p178 = pnand %p176, %p177
      %p179 = pneg %p178
      // Predicated region
      $region9: #{tpu_custom_call.1} parent=5 // pred_check
        _
      $region10: #{tpu_custom_call.1} parent=5 // pred_check_branch
        %181 = sbr.rel (%p178) target = $region12
      $region11: #{tpu_custom_call.1} parent=5 // pred_region
        %s182 = ssub.s32 %s18, 1
        // Predicated region
        $region13: #{tpu_custom_call.1} parent=11 // pred_check
          %p183 = pneg %p79
        $region14: #{tpu_custom_call.1} parent=11 // pred_check_branch
          %185 = sbr.rel (%p183) target = $region16
        $region15: #{tpu_custom_call.1} parent=11 // pred_region
          %s187 = ssub.s32 512, 512
          %188 = vsyncadd [#allocation7], %s187
          %s189 = sshll.u32 [#allocation6], 4
          %s190 = int_to_ptr.vmem [resolvable:$true] %s189
          %195 = dma.hbm_to_vmem [thread:$0]  %s1, 512, %s190, [#allocation7], 128, 128, 8
        $region16: #{tpu_custom_call.1} parent=11 // pred_fallthru
          _
        // Predicated region
        $region17: #{tpu_custom_call.1} parent=11 // pred_check
          %p196 = pneg %p100
        $region18: #{tpu_custom_call.1} parent=11 // pred_check_branch
          %198 = sbr.rel (%p196) target = $region20
        $region19: #{tpu_custom_call.1} parent=11 // pred_region
          _
        $region20: #{tpu_custom_call.1} parent=11 // pred_fallthru
          _
        // Predicated region
        $region21: #{tpu_custom_call.1} parent=11 // pred_check
          %p199 = pneg %p121
        $region22: #{tpu_custom_call.1} parent=11 // pred_check_branch
          %201 = sbr.rel (%p199) target = $region24
        $region23: #{tpu_custom_call.1} parent=11 // pred_region
          _
        $region24: #{tpu_custom_call.1} parent=11 // pred_fallthru
          _
        // Predicated region
        $region25: #{tpu_custom_call.1} parent=11 // pred_check
          %p202 = pneg %p142
        $region26: #{tpu_custom_call.1} parent=11 // pred_check_branch
          %204 = sbr.rel (%p202) target = $region28
        $region27: #{tpu_custom_call.1} parent=11 // pred_region
          _
        $region28: #{tpu_custom_call.1} parent=11 // pred_fallthru
          _
      $region12: #{tpu_custom_call.1} parent=5 // pred_fallthru
        _
      %p205 = scmp.lt.s32.totalorder %s18, 2
      // Predicated region
      $region29: #{tpu_custom_call.1} parent=5 // pred_check
        %p206 = pneg %p205
      $region30: #{tpu_custom_call.1} parent=5 // pred_check_branch
        %208 = sbr.rel (%p206) target = $region32
      $region31: #{tpu_custom_call.1} parent=5 // pred_region
        // Predicated region
        $region33: #{tpu_custom_call.1} parent=31 // pred_check
          %p209 = pneg %p52
        $region34: #{tpu_custom_call.1} parent=31 // pred_check_branch
          %211 = sbr.rel (%p209) target = $region36
        $region35: #{tpu_custom_call.1} parent=31 // pred_region
          %s212 = sand.u32 %s42, 1
          %s213 = scalar_lea.sflag [#allocation4], %s212
          %s214 = sand.u32 %s42, 1
          %s215 = smul.addr %s214, 8
          %s216 = scalar_lea.vmem [#allocation3], %s215
          %s217 = sadd.s32 %s25, %s26
          %s219 = ssub.s32 128, 128
          %220 = vsyncadd %s213, %s219
          %s221 = smul.addr %s217, 128
          %s222 = scalar_lea.hbm %s0, %s221
          %s224 = sshll.u32 %s216, 4
          %s225 = int_to_ptr.vmem [resolvable:$true] %s224
          %227 = dma.hbm_to_vmem [thread:$0]  %s222, 128, %s225, %s213
        $region36: #{tpu_custom_call.1} parent=31 // pred_fallthru
          _
      $region32: #{tpu_custom_call.1} parent=5 // pred_fallthru
        _
      %p228 = scmp.le.s32.totalorder 1, %s18
      %p229 = scmp.lt.s32.totalorder %s18, 3
      %p230 = pnand %p228, %p229
      %p231 = pneg %p230
      // Predicated region
      $region37: #{tpu_custom_call.1} parent=5 // pred_check
        _
      $region38: #{tpu_custom_call.1} parent=5 // pred_check_branch
        %233 = sbr.rel (%p230) target = $region40
      $region39: #{tpu_custom_call.1} parent=5 // pred_region
        %s234 = ssub.s32 %s18, 1
        %s235 = sand.u32 %s45, 1
        %s236 = scalar_lea.sflag [#allocation4], %s235
        %s237 = sand.u32 %s45, 1
        %s238 = smul.addr %s237, 8
        %s239 = scalar_lea.vmem [#allocation3], %s238
        // Predicated region
        $region41: #{tpu_custom_call.1} parent=39 // pred_check
          %p240 = pneg %p58
        $region42: #{tpu_custom_call.1} parent=39 // pred_check_branch
          %242 = sbr.rel (%p240) target = $region44
        $region43: #{tpu_custom_call.1} parent=39 // pred_region
          %243 = dma.done %s236, 128
        $region44: #{tpu_custom_call.1} parent=39 // pred_fallthru
          _
        // Predicated region
        $region45: #{tpu_custom_call.1} parent=39 // pred_check
          %p244 = pneg %p79
        $region46: #{tpu_custom_call.1} parent=39 // pred_check_branch
          %246 = sbr.rel (%p244) target = $region48
        $region47: #{tpu_custom_call.1} parent=39 // pred_region
          %247 = dma.done [#allocation7], 512
        $region48: #{tpu_custom_call.1} parent=39 // pred_fallthru
          _
        %s248 = sand.u32 %s45, 1
        %s249 = scalar_lea.sflag [#allocation4], %s248
        %s250 = sand.u32 %s45, 1
        %s251 = smul.addr %s250, 8
        %s252 = scalar_lea.vmem [#allocation3], %s251
        %p253 = pneg %p58
        %p254 = pneg %p55
        %p255 = pneg %p79
        %p256 = pneg %p76
        %p257 = pneg %p100
        %p258 = pneg %p97
        %p259 = pneg %p121
        %p260 = pneg %p118
        %p261 = pneg %p142
        %p262 = pneg %p139
        %p263 = pneg %p168
        %p264 = pneg %p165
        %s265 = sand.u32 %s155, 1
        %s266 = scalar_lea.sflag [#allocation5], %s265
        %s267 = sand.u32 %s155, 1
        %s268 = smul.addr %s267, 2
        %s269 = scalar_lea.vmem [#allocation8], %s268
        %s270 = sadd.s32 %s27, %s28
        %v271 = vld [vmem:[%s239] sm:$0xff]
        %vm272 = vcmask 261120
        %v273 = vsel %vm272, %v271, 0.0
        %274 = vadd.xlane.f32.xlu0 %v273
        %v275 = vpop.xlane.xlu0 %274
        %v276 = vrcp.pop 32.0
        %v277 = vmul.f32 %v275, %v276
        %v278 = vmul.f32 %v271, %v271
        %v279 = vsel %vm272, %v278, 0.0
        %280 = vadd.xlane.f32.xlu0 %v279
        %v281 = vpop.xlane.xlu0 %280
        %v282 = vmul.f32 %v281, %v276
        %v283 = vmul.f32 %v277, %v277
        %v284 = vsub.f32 %v282, %v283
        %v285 = vmax.f32 %v284, 0.0
        %v286 = vsub.f32 %v271, %v277
        %v287 = vadd.f32 %v285, 1e-05
        %v288 = vrsqrt.pop %v287
        %v289 = vmul.f32 %v286, %v288
        %v290 = vld [vmem:[#allocation6] sm:$0xff]
        %v291 = vld [vmem:[#allocation6 + $0x8] sm:$0xff]
        %v292 = vld [vmem:[#allocation6 + $0x10] sm:$0xff]
        %v293 = vld [vmem:[#allocation6 + $0x18] sm:$0xff]
        %v294 = vld [vmem:[%s2] sm:$0x1]
        %v296 = vlaneseq
        %v297 = vshrl.u32 %v296, 7
        %v298 = vsub.s32 0, %v297
        %v299 = vrot.slane %v294, %v298
        %v302 = vsel %vm272, %v289, 0
        %304 = vmatprep.subr.mxu0 0.0
        %305 = vmatpush1.msra.mxu0 %v290
        %306 = vmatprep.subr.mxu0 0.0
        %307 = vmatpush1.msra.mxu0 %v291
        %308 = vmatprep.subr.mxu0 0.0
        %309 = vmatpush1.msra.mxu0 %v292
        %310 = vmatprep.subr.mxu0 0.0
        %311 = vmatpush1.msra.mxu0 %v293
        %312 = vmatprep.subr.mxu0 0.0
        %313 = vmatpush1.msra.mxu0 0.0
        %314 = vmatprep.subr.mxu0 0.0
        %315 = vmatpush1.msra.mxu0 0.0
        %316 = vmatprep.subr.mxu0 0.0
        %317 = vmatpush1.msra.mxu0 0.0
        %318 = vmatprep.subr.mxu0 0.0
        %319 = vmatpush1.msra.mxu0 0.0
        %320 = vmatprep.subr.mxu0 0.0
        %321 = vmatpush1.msra.mxu0 0.0
        %322 = vmatprep.subr.mxu0 0.0
        %323 = vmatpush1.msra.mxu0 0.0
        %324 = vmatprep.subr.mxu0 0.0
        %325 = vmatpush1.msra.mxu0 0.0
        %326 = vmatprep.subr.mxu0 0.0
        %327 = vmatpush1.msra.mxu0 0.0
        %328 = vmatprep.subr.mxu0 0.0
        %329 = vmatpush1.msra.mxu0 0.0
        %330 = vmatprep.subr.mxu0 0.0
        %331 = vmatpush1.msra.mxu0 0.0
        %332 = vmatprep.subr.mxu0 0.0
        %333 = vmatpush1.msra.mxu0 0.0
        %334 = vmatprep.subr.mxu0 0.0
        %335 = vmatpush1.msra.mxu0 0.0
        %336 = vmatprep.subr.mxu0 0.0
        %337 = vmatpush1.msra.mxu0 0.0
        %338 = vmatprep.subr.mxu0 0.0
        %339 = vmatpush1.msra.mxu0 0.0
        %340 = vmatprep.subr.mxu0 0.0
        %341 = vmatpush1.msra.mxu0 0.0
        %342 = vmatprep.subr.mxu0 0.0
        %343 = vmatpush1.msra.mxu0 0.0
        %344 = vmatprep.subr.mxu0 0.0
        %345 = vmatpush1.msra.mxu0 0.0
        %346 = vmatprep.subr.mxu0 0.0
        %347 = vmatpush1.msra.mxu0 0.0
        %348 = vmatprep.subr.mxu0 0.0
        %349 = vmatpush1.msra.mxu0 0.0
        %350 = vmatprep.subr.mxu0 0.0
        %351 = vmatpush1.msra.mxu0 0.0
        %352 = vmatprep.subr.mxu0 0.0
        %353 = vmatpush1.msra.mxu0 0.0
        %354 = vmatprep.subr.mxu0 0.0
        %355 = vmatpush1.msra.mxu0 0.0
        %356 = vmatprep.subr.mxu0 0.0
        %357 = vmatpush1.msra.mxu0 0.0
        %358 = vmatprep.subr.mxu0 0.0
        %359 = vmatpush1.msra.mxu0 0.0
        %360 = vmatprep.subr.mxu0 0.0
        %361 = vmatpush1.msra.mxu0 0.0
        %362 = vmatprep.subr.mxu0 0.0
        %363 = vmatpush1.msra.mxu0 0.0
        %364 = vmatprep.subr.mxu0 0.0
        %365 = vmatpush1.msra.mxu0 0.0
        %366 = vmatprep.subr.mxu0 0.0
        %367 = vmatpush1.msra.mxu0 0.0
        %368 = vmatprep.mubr.f32.mxu0 0.0
        %369 = vmatmul.mubr.f32.gmra.mrb[0].mxu0 %v302
        %v370 = vpop.f32.mrb[0].mxu0
        %v371 = vadd.f32 %v299, %v370
        %v372 = vpop.f32.mrb[0].mxu0
        %373 = vdwg.mxu0
        %v374 = vmul.f32 %v371, 0.5
        %v375 = vmul.f32 %v371, 0.044715
        %v376 = vmul.f32 %v375, %v371
        %v377 = vmul.f32 %v376, %v371
        %v378 = vadd.f32 %v371, %v377
        %v379 = vmul.f32 %v378, 0.7978846
        %v380 = vtanh.pop %v379
        %v381 = vadd.f32 %v380, 1.0
        %v382 = vmul.f32 %v374, %v381
        %vm383 = vcmask 523264
        %v384 = vsel %vm383, %v382, 0.0
        %v385 = vrot.slane %v384, 4
        %v386 = vadd.f32 %v384, %v385
        %v387 = vrot.slane %v386, 2
        %v388 = vadd.f32 %v386, %v387
        %v389 = vrot.slane %v388, 1
        %v390 = vadd.f32 %v388, %v389
        %p391 = scmp.eq.s32.totalorder %s28, 0
        // Predicated region
        $region49: #{tpu_custom_call.1} parent=39 // pred_check
          %p392 = pneg %p391
        $region50: #{tpu_custom_call.1} parent=39 // pred_check_branch
          %394 = sbr.rel (%p392) target = $region52
        $region51: #{tpu_custom_call.1} parent=39 // pred_region
          %vm395 = vcmask 516096
          %396 = vst.msk [vmem:[#allocation2] sm:$0x1] %vm395, %v390
        $region52: #{tpu_custom_call.1} parent=39 // pred_fallthru
          _
        %p397 = scmp.gt.s32.totalorder %s28, 0
        // Predicated region
        $region53: #{tpu_custom_call.1} parent=39 // pred_check
          %p398 = pneg %p397
        $region54: #{tpu_custom_call.1} parent=39 // pred_check_branch
          %400 = sbr.rel (%p398) target = $region56
        $region55: #{tpu_custom_call.1} parent=39 // pred_region
          %v401 = vld [vmem:[#allocation2] sm:$0x1]
          %v402 = vadd.f32 %v401, %v390
          %vm403 = vcmask 516096
          %404 = vst.msk [vmem:[#allocation2] sm:$0x1] %vm403, %v402
        $region56: #{tpu_custom_call.1} parent=39 // pred_fallthru
          _
        // Predicated region
        $region57: #{tpu_custom_call.1} parent=39 // pred_check
          %p405 = pneg %p391
        $region58: #{tpu_custom_call.1} parent=39 // pred_check_branch
          %407 = sbr.rel (%p405) target = $region60
        $region59: #{tpu_custom_call.1} parent=39 // pred_region
          %v408 = vld [vmem:[#allocation2] sm:$0x1]
          %v409 = vld [vmem:[%s3] sm:$0x1]
          %v410 = vmul.f32 %v408, %v409
          %vm411 = vcmask 253952
          %v412 = vsel %vm411, %v410, 0.0
          %413 = vadd.xlane.f32.xlu0 %v412
          %v414 = vpop.xlane.xlu0 %413
          %v415 = vmul.f32 %v414, 0.125
          %v416 = vld [vmem:[%s4] sm:$0x1]
          %v417 = vadd.f32 %v415, %v416
          %v419 = vlaneseq
          %v420 = vshrl.u32 %v419, 7
          %v421 = vsub.s32 0, %v420
          %v422 = vrot.slane %v410, %v421
          %423 = vrot.lane.b32.xlu0 %v422, 96
          %v424 = vpop.permute.xlu0 %423
          %v426 = vsel %vm411, %v424, 0.0
          %427 = vadd.xlane.f32.xlu0 %v426
          %v428 = vpop.xlane.xlu0 %427
          %v429 = vmul.f32 %v428, 0.125
          %v431 = vlaneseq
          %v432 = vshrl.u32 %v431, 7
          %v433 = vsub.s32 0, %v432
          %v434 = vrot.slane %v416, %v433
          %435 = vrot.lane.b32.xlu0 %v434, 127
          %v436 = vpop.permute.xlu0 %435
          %v438 = vadd.f32 %v429, %v436
          %v440 = vrot.slane %v438, 7
          %vm442 = vcmask 1040384
          %v443 = vsel %vm442, %v417, %v440
          %445 = vset.pattern.permute.xlu0 0
          %446 = vperm.xlu0 %445, %v443
          %v447 = vpop.permute.xlu0 %446
          %449 = vst [vmem:[%s269] sm:$0x3] %v447
        $region60: #{tpu_custom_call.1} parent=39 // pred_fallthru
          _
        %s450 = sand.u32 %s155, 1
        %s451 = scalar_lea.sflag [#allocation5], %s450
        %s452 = sand.u32 %s155, 1
        %s453 = smul.addr %s452, 2
        %s454 = scalar_lea.vmem [#allocation8], %s453
        // Predicated region
        $region61: #{tpu_custom_call.1} parent=39 // pred_check
          %p455 = pneg %p165
        $region62: #{tpu_custom_call.1} parent=39 // pred_check_branch
          %457 = sbr.rel (%p455) target = $region64
        $region63: #{tpu_custom_call.1} parent=39 // pred_region
          %s459 = ssub.s32 32, 32
          %460 = vsyncadd %s451, %s459
          %s461 = smul.addr %s27, 32
          %s462 = scalar_lea.hbm %s5, %s461
          %s464 = sshll.u32 %s454, 4
          %s465 = int_to_ptr.vmem [resolvable:$true] %s464
          %467 = dma.vmem_to_hbm [thread:$0]  %s465, 32, %s462, %s451
        $region64: #{tpu_custom_call.1} parent=39 // pred_fallthru
          _
      $region40: #{tpu_custom_call.1} parent=5 // pred_fallthru
        _
      %p468 = scmp.le.s32.totalorder 2, %s18
      // Predicated region
      $region65: #{tpu_custom_call.1} parent=5 // pred_check
        %p469 = pneg %p468
      $region66: #{tpu_custom_call.1} parent=5 // pred_check_branch
        %471 = sbr.rel (%p469) target = $region68
      $region67: #{tpu_custom_call.1} parent=5 // pred_region
        %s472 = ssub.s32 %s18, 2
        // Predicated region
        $region69: #{tpu_custom_call.1} parent=67 // pred_check
          %p473 = pneg %p171
        $region70: #{tpu_custom_call.1} parent=67 // pred_check_branch
          %475 = sbr.rel (%p473) target = $region72
        $region71: #{tpu_custom_call.1} parent=67 // pred_region
          %s476 = sand.u32 %s156, 1
          %s477 = scalar_lea.sflag [#allocation5], %s476
          %s478 = sand.u32 %s156, 1
          %s479 = smul.addr %s478, 2
          %s480 = scalar_lea.vmem [#allocation8], %s479
          %481 = dma.done %s477, 32
        $region72: #{tpu_custom_call.1} parent=67 // pred_fallthru
          _
      $region68: #{tpu_custom_call.1} parent=5 // pred_fallthru
        _
    $region6: #{tpu_custom_call.1} parent=1 // loop_footer
      %s22 = sadd.s32 1, %s18
    $region7: #{tpu_custom_call.1} parent=1 // loop_footer_branch
      %17 = sbr.rel target = $region3
    $region8: #{tpu_custom_call.1} parent=1 // loop_exit
      _
    %482 = vsyncpa [#allocation4], 1
    %s483 = scalar_lea.sflag [#allocation4], 1
    %484 = vsyncpa %s483, 1
    %485 = vsyncpa [#allocation7], 1
    %486 = vsyncpa [#allocation5], 1
    %s487 = scalar_lea.sflag [#allocation5], 1
    %488 = vsyncpa %s487, 1

// kernel: tpu_custom_call.1
$region0: #{tpu_custom_call.1}
  #allocation0 [shape = 'u32[]', space=smem, size = 0x4, offset = 0x4, fixed_abs, tag = 'smem constant byte address 0x4 - core index']
  #allocation1 [shape = 'u32[144,128]{1,0:T(1,128)}', space=vmem, size = 0x12000, scoped, tag = 'internal scratch']
  #allocation2 [shape = 'f32[1,64]{1,0:T(1,128)}', space=vmem, size = 0x200, scoped, tag = 'scratch operand']
  %s0 = inlined_call_operand.hbm [shape: f32[16,32], index: 0, kind: input, shape index: {}]
  %s1 = inlined_call_operand.hbm [shape: f32[32,64], index: 1, kind: input, shape index: {}]
  %s2 = inlined_call_operand.vmem [shape: f32[1,64], index: 2, kind: input, shape index: {}]
  %s3 = inlined_call_operand.vmem [shape: f32[1,64], index: 3, kind: input, shape index: {}]
  %s4 = inlined_call_operand.vmem [shape: f32[1,2], index: 4, kind: input, shape index: {}]
  %s5 = inlined_call_operand.hbm [shape: f32[2,2,128], index: 5, kind: output, shape index: {}]
  %s6 = sld [smem:[#allocation0]]
  $region73: #{tpu_custom_call.1} parent=0
    _
  %s8 = ssub.s32 1, %s6
  %s9 = scalar_select 0, %s8, %s6
  $region1: #{tpu_custom_call.1} parent=0
    #allocation3 [shape = 'u8[8192]{0}', space=vmem, size = 0x2000, scoped, tag = 'input window, operand 0']
    #allocation4 [shape = 's32[2]{0}', space=sflag, size = 0x8, scoped, tag = 'scoped memory for tpu_custom_call.1']
    #allocation5 [shape = 's32[2]{0}', space=sflag, size = 0x8, scoped, tag = 'scoped memory for tpu_custom_call.1']
    #allocation6 [shape = 'u8[16384]{0}', space=vmem, size = 0x4000, scoped, tag = 'input window, operand 1, single buffered']
    #allocation7 [shape = 's32[1]{0}', space=sflag, size = 0x4, scoped, tag = 'scoped memory for tpu_custom_call.1']
    #allocation8 [shape = 'u8[2048]{0}', space=vmem, size = 0x800, scoped, tag = 'output window, operand 0']
    %10 = vsyncpa [#allocation4], 0
    %s11 = scalar_lea.sflag [#allocation4], 1
    %12 = vsyncpa %s11, 0
    %13 = vsyncpa [#allocation7], 0
    %14 = vsyncpa [#allocation5], 0
    %s15 = scalar_lea.sflag [#allocation5], 1
    %16 = vsyncpa %s15, 0
    loop: start=0, step=1, limit=4
    $region2: #{tpu_custom_call.1} parent=1 // loop_pre_header
      _
    $region3: #{tpu_custom_call.1} parent=1 // loop_header
      %s18 = sphi 0, %s22
      %p19 = scmp.ge.s32.totalorder %s18, 4
      %s25 = sphi 0, %s37
      %s26 = sphi 0, %s33
      %s27 = sphi 0, %s25
      %s28 = sphi 0, %s26
      %s29 = sphi 0, %s27
      %s30 = sphi 0, %s28
      %s42 = sphi 0, %s44
      %s45 = sphi 0, %s42
      %s46 = sphi 0, %s45
      %s62 = sphi 0, %s46
      %s66 = sphi 0, %s66
      %s68 = sphi 0, %s66
      %s69 = sphi 0, %s68
      %s83 = sphi 0, %s69
      %s87 = sphi 0, %s87
      %s89 = sphi 0, %s87
      %s90 = sphi 0, %s89
      %s104 = sphi 0, %s90
      %s108 = sphi 0, %s108
      %s110 = sphi 0, %s108
      %s111 = sphi 0, %s110
      %s125 = sphi 0, %s111
      %s129 = sphi 0, %s129
      %s131 = sphi 0, %s129
      %s132 = sphi 0, %s131
      %s146 = sphi 0, %s132
      %s152 = sphi 0, %s154
      %s155 = sphi 0, %s152
      %s156 = sphi 0, %s155
      %s172 = sphi 0, %s156
    $region4: #{tpu_custom_call.1} parent=1 // loop_header_branch
      %21 = sbr.rel (%p19) target = $region8
    $region5: #{tpu_custom_call.1} parent=1 // loop_body
      %s23 = ssub.s32 %s18, 1
      %s24 = ssub.s32 %s18, 2
      %s31 = sadd.s32 1, %s26
      %p32 = scmp.ge.s32.totalorder %s31, 1
      %s33 = scalar_select %p32, 0, %s31
      %s34 = sadd.s32 1, %s25
      %s35 = scalar_select %p32, %s34, %s25
      %p36 = scmp.ge.s32.totalorder %s35, 2
      %s37 = scalar_select %p36, 0, %s35
      %s38 = sadd.s32 %s25, %s26
      %s39 = sadd.s32 %s37, %s33
      %s40 = ssub.s32 %s38, %s39
      %p41 = scmp.eq.s32.totalorder %s40, 0
      %s43 = sadd.s32 %s42, 1
      %s44 = scalar_select %p41, %s42, %s43
      %p47 = pneg %p41
      %p48 = scmp.eq.s32.totalorder %s18, 1
      %p49 = por %p47, %p48
      %p50 = scmp.ne.s32.totalorder %s42, %s45
      %p51 = scmp.eq.s32.totalorder %s18, 0
      %p52 = por %p50, %p51
      %p53 = scmp.ne.s32.totalorder %s42, %s45
      %p54 = scmp.eq.s32.totalorder %s23, 1
      %p55 = por %p53, %p54
      %p56 = scmp.ne.s32.totalorder %s45, %s46
      %p57 = scmp.eq.s32.totalorder %s23, 0
      %p58 = por %p56, %p57
      %p59 = scmp.ne.s32.totalorder %s45, %s46
      %p60 = scmp.eq.s32.totalorder %s24, 1
      %p61 = por %p59, %p60
      %p63 = scmp.ne.s32.totalorder %s46, %s62
      %p64 = scmp.eq.s32.totalorder %s24, 0
      %p65 = por %p63, %p64
      %s67 = sadd.s32 %s66, 1
      %p70 = scmp.eq.s32.totalorder %s18, 1
      %p71 = scmp.ne.s32.totalorder %s66, %s68
      %p72 = scmp.eq.s32.totalorder %s18, 0
      %p73 = por %p71, %p72
      %p74 = scmp.ne.s32.totalorder %s66, %s68
      %p75 = scmp.eq.s32.totalorder %s23, 1
      %p76 = por %p74, %p75
      %p77 = scmp.ne.s32.totalorder %s68, %s69
      %p78 = scmp.eq.s32.totalorder %s23, 0
      %p79 = por %p77, %p78
      %p80 = scmp.ne.s32.totalorder %s68, %s69
      %p81 = scmp.eq.s32.totalorder %s24, 1
      %p82 = por %p80, %p81
      %p84 = scmp.ne.s32.totalorder %s69, %s83
      %p85 = scmp.eq.s32.totalorder %s24, 0
      %p86 = por %p84, %p85
      %s88 = sadd.s32 %s87, 1
      %p91 = scmp.eq.s32.totalorder %s18, 1
      %p92 = scmp.ne.s32.totalorder %s87, %s89
      %p93 = scmp.eq.s32.totalorder %s18, 0
      %p94 = por %p92, %p93
      %p95 = scmp.ne.s32.totalorder %s87, %s89
      %p96 = scmp.eq.s32.totalorder %s23, 1
      %p97 = por %p95, %p96
      %p98 = scmp.ne.s32.totalorder %s89, %s90
      %p99 = scmp.eq.s32.totalorder %s23, 0
      %p100 = por %p98, %p99
      %p101 = scmp.ne.s32.totalorder %s89, %s90
      %p102 = scmp.eq.s32.totalorder %s24, 1
      %p103 = por %p101, %p102
      %p105 = scmp.ne.s32.totalorder %s90, %s104
      %p106 = scmp.eq.s32.totalorder %s24, 0
      %p107 = por %p105, %p106
      %s109 = sadd.s32 %s108, 1
      %p112 = scmp.eq.s32.totalorder %s18, 1
      %p113 = scmp.ne.s32.totalorder %s108, %s110
      %p114 = scmp.eq.s32.totalorder %s18, 0
      %p115 = por %p113, %p114
      %p116 = scmp.ne.s32.totalorder %s108, %s110
      %p117 = scmp.eq.s32.totalorder %s23, 1
      %p118 = por %p116, %p117
      %p119 = scmp.ne.s32.totalorder %s110, %s111
      %p120 = scmp.eq.s32.totalorder %s23, 0
      %p121 = por %p119, %p120
      %p122 = scmp.ne.s32.totalorder %s110, %s111
      %p123 = scmp.eq.s32.totalorder %s24, 1
      %p124 = por %p122, %p123
      %p126 = scmp.ne.s32.totalorder %s111, %s125
      %p127 = scmp.eq.s32.totalorder %s24, 0
      %p128 = por %p126, %p127
      %s130 = sadd.s32 %s129, 1
      %p133 = scmp.eq.s32.totalorder %s18, 1
      %p134 = scmp.ne.s32.totalorder %s129, %s131
      %p135 = scmp.eq.s32.totalorder %s18, 0
      %p136 = por %p134, %p135
      %p137 = scmp.ne.s32.totalorder %s129, %s131
      %p138 = scmp.eq.s32.totalorder %s23, 1
      %p139 = por %p137, %p138
      %p140 = scmp.ne.s32.totalorder %s131, %s132
      %p141 = scmp.eq.s32.totalorder %s23, 0
      %p142 = por %p140, %p141
      %p143 = scmp.ne.s32.totalorder %s131, %s132
      %p144 = scmp.eq.s32.totalorder %s24, 1
      %p145 = por %p143, %p144
      %p147 = scmp.ne.s32.totalorder %s132, %s146
      %p148 = scmp.eq.s32.totalorder %s24, 0
      %p149 = por %p147, %p148
      %s150 = ssub.s32 %s25, %s37
      %p151 = scmp.eq.s32.totalorder %s150, 0
      %s153 = sadd.s32 %s152, 1
      %s154 = scalar_select %p151, %s152, %s153
      %p157 = pneg %p151
      %p158 = scmp.eq.s32.totalorder %s18, 1
      %p159 = por %p157, %p158
      %p160 = scmp.ne.s32.totalorder %s152, %s155
      %p161 = scmp.eq.s32.totalorder %s18, 0
      %p162 = por %p160, %p161
      %p163 = scmp.ne.s32.totalorder %s152, %s155
      %p164 = scmp.eq.s32.totalorder %s23, 1
      %p165 = por %p163, %p164
      %p166 = scmp.ne.s32.totalorder %s155, %s156
      %p167 = scmp.eq.s32.totalorder %s23, 0
      %p168 = por %p166, %p167
      %p169 = scmp.ne.s32.totalorder %s155, %s156
      %p170 = scmp.eq.s32.totalorder %s24, 1
      %p171 = por %p169, %p170
      %p173 = scmp.ne.s32.totalorder %s156, %s172
      %p174 = scmp.eq.s32.totalorder %s24, 0
      %p175 = por %p173, %p174
      %p176 = scmp.le.s32.totalorder 1, %s18
      %p177 = scmp.lt.s32.totalorder %s18, 3
      %p178 = pnand %p176, %p177
      %p179 = pneg %p178
      // Predicated region
      $region9: #{tpu_custom_call.1} parent=5 // pred_check
        _
      $region10: #{tpu_custom_call.1} parent=5 // pred_check_branch
        %181 = sbr.rel (%p178) target = $region12
      $region11: #{tpu_custom_call.1} parent=5 // pred_region
        %s182 = ssub.s32 %s18, 1
        // Predicated region
        $region13: #{tpu_custom_call.1} parent=11 // pred_check
          %p183 = pneg %p79
        $region14: #{tpu_custom_call.1} parent=11 // pred_check_branch
          %185 = sbr.rel (%p183) target = $region16
        $region15: #{tpu_custom_call.1} parent=11 // pred_region
          %s187 = ssub.s32 512, 512
          %188 = vsyncadd [#allocation7], %s187
          %s189 = sshll.u32 [#allocation6], 4
          %s190 = int_to_ptr.vmem [resolvable:$true] %s189
          %195 = dma.hbm_to_vmem [thread:$0]  %s1, 512, %s190, [#allocation7], 128, 128, 8
        $region16: #{tpu_custom_call.1} parent=11 // pred_fallthru
          _
        // Predicated region
        $region17: #{tpu_custom_call.1} parent=11 // pred_check
          %p196 = pneg %p100
        $region18: #{tpu_custom_call.1} parent=11 // pred_check_branch
          %198 = sbr.rel (%p196) target = $region20
        $region19: #{tpu_custom_call.1} parent=11 // pred_region
          _
        $region20: #{tpu_custom_call.1} parent=11 // pred_fallthru
          _
        // Predicated region
        $region21: #{tpu_custom_call.1} parent=11 // pred_check
          %p199 = pneg %p121
        $region22: #{tpu_custom_call.1} parent=11 // pred_check_branch
          %201 = sbr.rel (%p199) target = $region24
        $region23: #{tpu_custom_call.1} parent=11 // pred_region
          _
        $region24: #{tpu_custom_call.1} parent=11 // pred_fallthru
          _
        // Predicated region
        $region25: #{tpu_custom_call.1} parent=11 // pred_check
          %p202 = pneg %p142
        $region26: #{tpu_custom_call.1} parent=11 // pred_check_branch
          %204 = sbr.rel (%p202) target = $region28
        $region27: #{tpu_custom_call.1} parent=11 // pred_region
          _
        $region28: #{tpu_custom_call.1} parent=11 // pred_fallthru
          _
      $region12: #{tpu_custom_call.1} parent=5 // pred_fallthru
        _
      %p205 = scmp.lt.s32.totalorder %s18, 2
      // Predicated region
      $region29: #{tpu_custom_call.1} parent=5 // pred_check
        %p206 = pneg %p205
      $region30: #{tpu_custom_call.1} parent=5 // pred_check_branch
        %208 = sbr.rel (%p206) target = $region32
      $region31: #{tpu_custom_call.1} parent=5 // pred_region
        // Predicated region
        $region33: #{tpu_custom_call.1} parent=31 // pred_check
          %p209 = pneg %p52
        $region34: #{tpu_custom_call.1} parent=31 // pred_check_branch
          %211 = sbr.rel (%p209) target = $region36
        $region35: #{tpu_custom_call.1} parent=31 // pred_region
          %s212 = sand.u32 %s42, 1
          %s213 = scalar_lea.sflag [#allocation4], %s212
          %s214 = sand.u32 %s42, 1
          %s215 = smul.addr %s214, 8
          %s216 = scalar_lea.vmem [#allocation3], %s215
          %s217 = sadd.s32 %s25, %s26
          %s219 = ssub.s32 128, 128
          %220 = vsyncadd %s213, %s219
          %s221 = smul.addr %s217, 128
          %s222 = scalar_lea.hbm %s0, %s221
          %s224 = sshll.u32 %s216, 4
          %s225 = int_to_ptr.vmem [resolvable:$true] %s224
          %227 = dma.hbm_to_vmem [thread:$0]  %s222, 128, %s225, %s213
        $region36: #{tpu_custom_call.1} parent=31 // pred_fallthru
          _
      $region32: #{tpu_custom_call.1} parent=5 // pred_fallthru
        _
      %p228 = scmp.le.s32.totalorder 1, %s18
      %p229 = scmp.lt.s32.totalorder %s18, 3
      %p230 = pnand %p228, %p229
      %p231 = pneg %p230
      // Predicated region
      $region37: #{tpu_custom_call.1} parent=5 // pred_check
        _
      $region38: #{tpu_custom_call.1} parent=5 // pred_check_branch
        %233 = sbr.rel (%p230) target = $region40
      $region39: #{tpu_custom_call.1} parent=5 // pred_region
        %s234 = ssub.s32 %s18, 1
        %s235 = sand.u32 %s45, 1
        %s236 = scalar_lea.sflag [#allocation4], %s235
        %s237 = sand.u32 %s45, 1
        %s238 = smul.addr %s237, 8
        %s239 = scalar_lea.vmem [#allocation3], %s238
        // Predicated region
        $region41: #{tpu_custom_call.1} parent=39 // pred_check
          %p240 = pneg %p58
        $region42: #{tpu_custom_call.1} parent=39 // pred_check_branch
          %242 = sbr.rel (%p240) target = $region44
        $region43: #{tpu_custom_call.1} parent=39 // pred_region
          %243 = dma.done %s236, 128
        $region44: #{tpu_custom_call.1} parent=39 // pred_fallthru
          _
        // Predicated region
        $region45: #{tpu_custom_call.1} parent=39 // pred_check
          %p244 = pneg %p79
        $region46: #{tpu_custom_call.1} parent=39 // pred_check_branch
          %246 = sbr.rel (%p244) target = $region48
        $region47: #{tpu_custom_call.1} parent=39 // pred_region
          %247 = dma.done [#allocation7], 512
        $region48: #{tpu_custom_call.1} parent=39 // pred_fallthru
          _
        %s248 = sand.u32 %s45, 1
        %s249 = scalar_lea.sflag [#allocation4], %s248
        %s250 = sand.u32 %s45, 1
        %s251 = smul.addr %s250, 8
        %s252 = scalar_lea.vmem [#allocation3], %s251
        %p253 = pneg %p58
        %p254 = pneg %p55
        %p255 = pneg %p79
        %p256 = pneg %p76
        %p257 = pneg %p100
        %p258 = pneg %p97
        %p259 = pneg %p121
        %p260 = pneg %p118
        %p261 = pneg %p142
        %p262 = pneg %p139
        %p263 = pneg %p168
        %p264 = pneg %p165
        %s265 = sand.u32 %s155, 1
        %s266 = scalar_lea.sflag [#allocation5], %s265
        %s267 = sand.u32 %s155, 1
        %s268 = smul.addr %s267, 2
        %s269 = scalar_lea.vmem [#allocation8], %s268
        %s270 = sadd.s32 %s27, %s28
        %v271 = vld [vmem:[%s239] sm:$0xff]
        %vm272 = vcmask 261120
        %v273 = vsel %vm272, %v271, 0.0
        %274 = vadd.xlane.f32.xlu0 %v273
        %v275 = vpop.xlane.xlu0 %274
        %v276 = vrcp.pop 32.0
        %v277 = vmul.f32 %v275, %v276
        %v278 = vmul.f32 %v271, %v271
        %v279 = vsel %vm272, %v278, 0.0
        %280 = vadd.xlane.f32.xlu0 %v279
        %v281 = vpop.xlane.xlu0 %280
        %v282 = vmul.f32 %v281, %v276
        %v283 = vmul.f32 %v277, %v277
        %v284 = vsub.f32 %v282, %v283
        %v285 = vmax.f32 %v284, 0.0
        %v286 = vsub.f32 %v271, %v277
        %v287 = vadd.f32 %v285, 1e-05
        %v288 = vrsqrt.pop %v287
        %v289 = vmul.f32 %v286, %v288
        %v290 = vld [vmem:[#allocation6] sm:$0xff]
        %v291 = vld [vmem:[#allocation6 + $0x8] sm:$0xff]
        %v292 = vld [vmem:[#allocation6 + $0x10] sm:$0xff]
        %v293 = vld [vmem:[#allocation6 + $0x18] sm:$0xff]
        %v294 = vld [vmem:[%s2] sm:$0x1]
        %v296 = vlaneseq
        %v297 = vshrl.u32 %v296, 7
        %v298 = vsub.s32 0, %v297
        %v299 = vrot.slane %v294, %v298
        %v302 = vsel %vm272, %v289, 0
        %304 = vmatprep.subr.mxu0 0.0
        %305 = vmatpush1.msra.mxu0 %v290
        %306 = vmatprep.subr.mxu0 0.0
        %307 = vmatpush1.msra.mxu0 %v291
        %308 = vmatprep.subr.mxu0 0.0
        %309 = vmatpush1.msra.mxu0 %v292
        %310 = vmatprep.subr.mxu0 0.0
        %311 = vmatpush1.msra.mxu0 %v293
        %312 = vmatprep.subr.mxu0 0.0
        %313 = vmatpush1.msra.mxu0 0.0
        %314 = vmatprep.subr.mxu0 0.0
        %315 = vmatpush1.msra.mxu0 0.0
        %316 = vmatprep.subr.mxu0 0.0
        %317 = vmatpush1.msra.mxu0 0.0
        %318 = vmatprep.subr.mxu0 0.0
        %319 = vmatpush1.msra.mxu0 0.0
        %320 = vmatprep.subr.mxu0 0.0
        %321 = vmatpush1.msra.mxu0 0.0
        %322 = vmatprep.subr.mxu0 0.0
        %323 = vmatpush1.msra.mxu0 0.0
        %324 = vmatprep.subr.mxu0 0.0
        %325 = vmatpush1.msra.mxu0 0.0
        %326 = vmatprep.subr.mxu0 0.0
        %327 = vmatpush1.msra.mxu0 0.0
        %328 = vmatprep.subr.mxu0 0.0
        %329 = vmatpush1.msra.mxu0 0.0
        %330 = vmatprep.subr.mxu0 0.0
        %331 = vmatpush1.msra.mxu0 0.0
        %332 = vmatprep.subr.mxu0 0.0
        %333 = vmatpush1.msra.mxu0 0.0
        %334 = vmatprep.subr.mxu0 0.0
        %335 = vmatpush1.msra.mxu0 0.0
        %336 = vmatprep.subr.mxu0 0.0
        %337 = vmatpush1.msra.mxu0 0.0
        %338 = vmatprep.subr.mxu0 0.0
        %339 = vmatpush1.msra.mxu0 0.0
        %340 = vmatprep.subr.mxu0 0.0
        %341 = vmatpush1.msra.mxu0 0.0
        %342 = vmatprep.subr.mxu0 0.0
        %343 = vmatpush1.msra.mxu0 0.0
        %344 = vmatprep.subr.mxu0 0.0
        %345 = vmatpush1.msra.mxu0 0.0
        %346 = vmatprep.subr.mxu0 0.0
        %347 = vmatpush1.msra.mxu0 0.0
        %348 = vmatprep.subr.mxu0 0.0
        %349 = vmatpush1.msra.mxu0 0.0
        %350 = vmatprep.subr.mxu0 0.0
        %351 = vmatpush1.msra.mxu0 0.0
        %352 = vmatprep.subr.mxu0 0.0
        %353 = vmatpush1.msra.mxu0 0.0
        %354 = vmatprep.subr.mxu0 0.0
        %355 = vmatpush1.msra.mxu0 0.0
        %356 = vmatprep.subr.mxu0 0.0
        %357 = vmatpush1.msra.mxu0 0.0
        %358 = vmatprep.subr.mxu0 0.0
        %359 = vmatpush1.msra.mxu0 0.0
        %360 = vmatprep.subr.mxu0 0.0
        %361 = vmatpush1.msra.mxu0 0.0
        %362 = vmatprep.subr.mxu0 0.0
        %363 = vmatpush1.msra.mxu0 0.0
        %364 = vmatprep.subr.mxu0 0.0
        %365 = vmatpush1.msra.mxu0 0.0
        %366 = vmatprep.subr.mxu0 0.0
        %367 = vmatpush1.msra.mxu0 0.0
        %368 = vmatprep.mubr.f32.mxu0 0.0
        %369 = vmatmul.mubr.f32.gmra.mrb[0].mxu0 %v302
        %v370 = vpop.f32.mrb[0].mxu0
        %v371 = vadd.f32 %v299, %v370
        %v372 = vpop.f32.mrb[0].mxu0
        %373 = vdwg.mxu0
        %v374 = vmul.f32 %v371, 0.5
        %v375 = vmul.f32 %v371, 0.044715
        %v376 = vmul.f32 %v375, %v371
        %v377 = vmul.f32 %v376, %v371
        %v378 = vadd.f32 %v371, %v377
        %v379 = vmul.f32 %v378, 0.7978846
        %v380 = vtanh.pop %v379
        %v381 = vadd.f32 %v380, 1.0
        %v382 = vmul.f32 %v374, %v381
        %vm383 = vcmask 523264
        %v384 = vsel %vm383, %v382, 0.0
        %v385 = vrot.slane %v384, 4
        %v386 = vadd.f32 %v384, %v385
        %v387 = vrot.slane %v386, 2
        %v388 = vadd.f32 %v386, %v387
        %v389 = vrot.slane %v388, 1
        %v390 = vadd.f32 %v388, %v389
        %p391 = scmp.eq.s32.totalorder %s28, 0
        // Predicated region
        $region49: #{tpu_custom_call.1} parent=39 // pred_check
          %p392 = pneg %p391
        $region50: #{tpu_custom_call.1} parent=39 // pred_check_branch
          %394 = sbr.rel (%p392) target = $region52
        $region51: #{tpu_custom_call.1} parent=39 // pred_region
          %vm395 = vcmask 516096
          %396 = vst.msk [vmem:[#allocation2] sm:$0x1] %vm395, %v390
        $region52: #{tpu_custom_call.1} parent=39 // pred_fallthru
          _
        %p397 = scmp.gt.s32.totalorder %s28, 0
        // Predicated region
        $region53: #{tpu_custom_call.1} parent=39 // pred_check
          %p398 = pneg %p397
        $region54: #{tpu_custom_call.1} parent=39 // pred_check_branch
          %400 = sbr.rel (%p398) target = $region56
        $region55: #{tpu_custom_call.1} parent=39 // pred_region
          %v401 = vld [vmem:[#allocation2] sm:$0x1]
          %v402 = vadd.f32 %v401, %v390
          %vm403 = vcmask 516096
          %404 = vst.msk [vmem:[#allocation2] sm:$0x1] %vm403, %v402
        $region56: #{tpu_custom_call.1} parent=39 // pred_fallthru
          _
        // Predicated region
        $region57: #{tpu_custom_call.1} parent=39 // pred_check
          %p405 = pneg %p391
        $region58: #{tpu_custom_call.1} parent=39 // pred_check_branch
          %407 = sbr.rel (%p405) target = $region60
        $region59: #{tpu_custom_call.1} parent=39 // pred_region
          %v408 = vld [vmem:[#allocation2] sm:$0x1]
          %v409 = vld [vmem:[%s3] sm:$0x1]
          %v410 = vmul.f32 %v408, %v409
          %vm411 = vcmask 253952
          %v412 = vsel %vm411, %v410, 0.0
          %413 = vadd.xlane.f32.xlu0 %v412
          %v414 = vpop.xlane.xlu0 %413
          %v415 = vmul.f32 %v414, 0.125
          %v416 = vld [vmem:[%s4] sm:$0x1]
          %v417 = vadd.f32 %v415, %v416
          %v419 = vlaneseq
          %v420 = vshrl.u32 %v419, 7
          %v421 = vsub.s32 0, %v420
          %v422 = vrot.slane %v410, %v421
          %423 = vrot.lane.b32.xlu0 %v422, 96
          %v424 = vpop.permute.xlu0 %423
          %v426 = vsel %vm411, %v424, 0.0
          %427 = vadd.xlane.f32.xlu0 %v426
          %v428 = vpop.xlane.xlu0 %427
          %v429 = vmul.f32 %v428, 0.125
          %v431 = vlaneseq
          %v432 = vshrl.u32 %v431, 7
          %v433 = vsub.s32 0, %v432
          %v434 = vrot.slane %v416, %v433
          %435 = vrot.lane.b32.xlu0 %v434, 127
          %v436 = vpop.permute.xlu0 %435
          %v438 = vadd.f32 %v429, %v436
          %v440 = vrot.slane %v438, 7
          %vm442 = vcmask 1040384
          %v443 = vsel %vm442, %v417, %v440
          %445 = vset.pattern.permute.xlu0 0
          %446 = vperm.xlu0 %445, %v443
          %v447 = vpop.permute.xlu0 %446
          %449 = vst [vmem:[%s269] sm:$0x3] %v447
        $region60: #{tpu_custom_call.1} parent=39 // pred_fallthru
          _
        %s450 = sand.u32 %s155, 1
        %s451 = scalar_lea.sflag [#allocation5], %s450
        %s452 = sand.u32 %s155, 1
        %s453 = smul.addr %s452, 2
        %s454 = scalar_lea.vmem [#allocation8], %s453
        // Predicated region
        $region61: #{tpu_custom_call.1} parent=39 // pred_check
          %p455 = pneg %p165
        $region62: #{tpu_custom_call.1} parent=39 // pred_check_branch
          %457 = sbr.rel (%p455) target = $region64
        $region63: #{tpu_custom_call.1} parent=39 // pred_region
          %s459 = ssub.s32 32, 32
          %460 = vsyncadd %s451, %s459
          %s461 = smul.addr %s27, 32
          %s462 = scalar_lea.hbm %s5, %s461
          %s464 = sshll.u32 %s454, 4
          %s465 = int_to_ptr.vmem [resolvable:$true] %s464
          %467 = dma.vmem_to_hbm [thread:$0]  %s465, 32, %s462, %s451
        $region64: #{tpu_custom_call.1} parent=39 // pred_fallthru
          _
      $region40: #{tpu_custom_call.1} parent=5 // pred_fallthru
        _
      %p468 = scmp.le.s32.totalorder 2, %s18
      // Predicated region
      $region65: #{tpu_custom_call.1} parent=5 // pred_check
        %p469 = pneg %p468
      $region66: #{tpu_custom_call.1} parent=5 // pred_check_branch
        %471 = sbr.rel (%p469) target = $region68
      $region67: #{tpu_custom_call.1} parent=5 // pred_region
        %s472 = ssub.s32 %s18, 2
        // Predicated region
        $region69: #{tpu_custom_call.1} parent=67 // pred_check
          %p473 = pneg %p171
        $region70: #{tpu_custom_call.1} parent=67 // pred_check_branch
          %475 = sbr.rel (%p473) target = $region72
        $region71: #{tpu_custom_call.1} parent=67 // pred_region
          %s476 = sand.u32 %s156, 1
          %s477 = scalar_lea.sflag [#allocation5], %s476
          %s478 = sand.u32 %s156, 1
          %s479 = smul.addr %s478, 2
          %s480 = scalar_lea.vmem [#allocation8], %s479
          %481 = dma.done %s477, 32
        $region72: #{tpu_custom_call.1} parent=67 // pred_fallthru
          _
      $region68: #{tpu_custom_call.1} parent=5 // pred_fallthru
        _
    $region6: #{tpu_custom_call.1} parent=1 // loop_footer
      %s22 = sadd.s32 1, %s18
    $region7: #{tpu_custom_call.1} parent=1 // loop_footer_branch
      %17 = sbr.rel target = $region3
    $region8: #{tpu_custom_call.1} parent=1 // loop_exit
      _
    %482 = vsyncpa [#allocation4], 1
    %s483 = scalar_lea.sflag [#allocation4], 1
    %484 = vsyncpa %s483, 1
    %485 = vsyncpa [#allocation7], 1
    %486 = vsyncpa [#allocation5], 1
    %s487 = scalar_lea.sflag [#allocation5], 1
    %488 = vsyncpa %s487, 1

</llo_original>
